<compile_context>
chip_gen: v7x
topology: tpu7x:2x2x1
jax: 0.10.0
libtpu: 0.0.40
codegen_flags: <defaults>
</compile_context>

<pallas_src>
import jax
import jax.numpy as jnp
from jax import lax
from jax.experimental import pallas as pl
from jax.experimental.pallas import tpu as pltpu

NIN = 11
NOUT = 5
HID = 200
BN_EPS = 1e-5

# Lane-aligned padded sizes.
NIN_P = 128
HID_P = 256
OUT_P = 128            # combined output: policy logits in lanes [0, NOUT), value in lane NOUT.

# --- packed weight blob layout (width W_COLS = 2*HID_P, bf16) ------------------
W_COLS = 2 * HID_P                    # 512
R0 = 0                                # lin:            rows [0, NIN_P),      cols [0, HID_P)
R1 = R0 + NIN_P                       # linp1|linv1:    rows [R1, R1+HID_P),  cols [0, 2*HID_P)
R2 = R1 + HID_P                       # linp2 / linv2:  rows [R2, R2+HID_P),  cols [0,HID_P) / [HID_P,2*HID_P)
R3 = R2 + HID_P                       # fused final:    rows [R3, R3+2*HID_P),cols [0, OUT_P)
W_ROWS = R3 + 2 * HID_P               # 1152

# --- packed bias blob layout (1 x B_COLS, f32) ----------------------------------
B0 = 0                                # lin            [0, HID_P)
B1 = HID_P                            # linp1|linv1    [HID_P, 3*HID_P)
B2P = 3 * HID_P                       # linp2          [3*HID_P, 4*HID_P)
B2V = 4 * HID_P                       # linv2          [4*HID_P, 5*HID_P)
B3 = 5 * HID_P                        # fused final    [5*HID_P, 5*HID_P + OUT_P)
B_COLS = B3 + OUT_P                   # 1408


def _deep_network_kernel(x_ref, w_ref, b_ref, out_ref):
    def lin_relu(h16, w, b):
        # Bias + eval-mode BatchNorm are pre-folded into (w, b): just relu(x@W + b).
        y = jnp.dot(h16, w, preferred_element_type=jnp.float32) + b
        return jnp.maximum(y, 0.0).astype(jnp.bfloat16)

    x = x_ref[...]                                                   # (TB, NIN_P) bf16

    # Shared trunk.
    h = lin_relu(x, w_ref[R0:R0 + NIN_P, 0:HID_P], b_ref[:, B0:B0 + HID_P])       # (TB, HID_P)

    # First layer of both heads fused into one (HID_P, 2*HID_P) matmul.
    hv = lin_relu(h, w_ref[R1:R1 + HID_P, :], b_ref[:, B1:B1 + 2 * HID_P])        # (TB, 2*HID_P)
    ph = hv[:, :HID_P]
    vh = hv[:, HID_P:]

    # Second layer of each head (two independent K=HID_P matmuls from the shared blob).
    ph = lin_relu(ph, w_ref[R2:R2 + HID_P, 0:HID_P], b_ref[:, B2P:B2P + HID_P])
    vh = lin_relu(vh, w_ref[R2:R2 + HID_P, HID_P:2 * HID_P], b_ref[:, B2V:B2V + HID_P])

    # Fused final layer: one K=2*HID_P, N=OUT_P matmul; policy -> lanes [0,NOUT),
    # value -> lane NOUT.  The concat is at a 256-lane boundary (whole-vreg moves).
    pv = jnp.concatenate([ph, vh], axis=-1)                          # (TB, 2*HID_P) bf16
    combined = (
        jnp.dot(pv, w_ref[R3:R3 + 2 * HID_P, 0:OUT_P], preferred_element_type=jnp.float32)
        + b_ref[:, B3:B3 + OUT_P]
    )                                                                # (TB, OUT_P) f32

    lane = lax.broadcasted_iota(jnp.int32, combined.shape, 1)
    is_policy = lane < NOUT
    is_value = lane == NOUT

    # Masked softmax over the NOUT policy lanes (f32 math, exact reciprocal).
    logits = jnp.where(is_policy, combined, -1e30)
    m = jnp.max(logits, axis=-1, keepdims=True)
    e = jnp.exp(logits - m)
    denom = jnp.sum(e, axis=-1, keepdims=True)
    soft = e * pl.reciprocal(denom, approx=False)

    out = jnp.where(is_policy, soft, jnp.where(is_value, combined, 0.0))
    out_ref[...] = out.astype(out_ref.dtype)                         # store bf16


def prepare_params(params):
    """One-time fold / transpose / pad / pack / cast of the PyTorch-layout parameters.

    - Linear weights -> (in, out); eval-mode BatchNorm folded into every hidden layer.
    - Zero-padded to lane-aligned shapes (HID 200->256, NIN 11->128).
    - linp1/linv1 fused side-by-side; linp3/linv3 fused into one (2*HID_P, OUT_P)
      block (policy -> lanes 0..4, value -> lane 5).
    - All weights packed into ONE bf16 blob, all biases into ONE f32 blob.
    """
    f32, bf16 = jnp.float32, jnp.bfloat16

    gamma = params["bn_gamma"].astype(f32)
    beta = params["bn_beta"].astype(f32)
    rmean = params["bn_running_mean"].astype(f32)
    rvar = params["bn_running_var"].astype(f32)
    scale = gamma / jnp.sqrt(rvar + BN_EPS)          # (HID,)
    shift = beta - rmean * scale                     # (HID,)

    def fold_bn(name):
        w = params[name + "_w"].astype(f32).T * scale[None, :]   # (in, HID)
        b = params[name + "_b"].astype(f32) * scale + shift      # (HID,)
        return w, b

    w0, b0 = fold_bn("lin")
    wp1, bp1 = fold_bn("linp1")
    wv1, bv1 = fold_bn("linv1")
    wp2, bp2 = fold_bn("linp2")
    wv2, bv2 = fold_bn("linv2")

    wp3 = params["linp3_w"].astype(f32).T            # (HID, NOUT)
    bp3 = params["linp3_b"].astype(f32)
    wv3 = params["linv3_w"].astype(f32).T            # (HID, 1)
    bv3 = params["linv3_b"].astype(f32)

    wblob = jnp.zeros((W_ROWS, W_COLS), f32)
    wblob = wblob.at[R0:R0 + NIN, 0:HID].set(w0)
    wblob = wblob.at[R1:R1 + HID, 0:HID].set(wp1)
    wblob = wblob.at[R1:R1 + HID, HID_P:HID_P + HID].set(wv1)
    wblob = wblob.at[R2:R2 + HID, 0:HID].set(wp2)
    wblob = wblob.at[R2:R2 + HID, HID_P:HID_P + HID].set(wv2)
    wblob = wblob.at[R3:R3 + HID, 0:NOUT].set(wp3)
    wblob = wblob.at[R3 + HID_P:R3 + HID_P + HID, NOUT:NOUT + 1].set(wv3)

    bblob = jnp.zeros((1, B_COLS), f32)
    bblob = bblob.at[0, B0:B0 + HID].set(b0)
    bblob = bblob.at[0, B1:B1 + HID].set(bp1)
    bblob = bblob.at[0, B1 + HID_P:B1 + HID_P + HID].set(bv1)
    bblob = bblob.at[0, B2P:B2P + HID].set(bp2)
    bblob = bblob.at[0, B2V:B2V + HID].set(bv2)
    bblob = bblob.at[0, B3:B3 + NOUT].set(bp3)
    bblob = bblob.at[0, B3 + NOUT].set(bv3[0])

    return wblob.astype(bf16), bblob


def _round_up(n, m):
    return ((n + m - 1) // m) * m


def _num_tensorcores():
    """Heuristic: v7x has 2 TensorCores per chip behind one Pallas grid; v5e/v6e have 1."""
    try:
        kind = jax.devices()[0].device_kind.lower()
    except Exception:
        return 1
    return 2 if "v7" in kind else 1


def deep_network_forward(x, prepared, *, max_tile=1024):
    """Forward pass matching DeepNetwork.forward (eval mode).

    x: (B, 11) or (11,).  `prepared` is the output of prepare_params().
    Returns (softmax_policy (B, 5), value (B, 1)), both float32.
    """
    if x.ndim == 1:
        x = x[None, :]
    B = x.shape[0]
    wblob, bblob = prepared

    # Batch tile: large tiles amortize the per-grid-step overhead (working set is a
    # few MiB at TB=1024, well under scoped VMEM on v5e/v6e/v7x).  On 2-core parts
    # split medium/large batches into >=2 tiles so both TensorCores get work.
    cores = _num_tensorcores()
    if cores > 1 and B > 32:
        target = pl.cdiv(B, cores)
    else:
        target = max(B, 1)
    TB = min(max_tile, _round_up(target, 16))
    B_pad = _round_up(B, TB)
    grid = (B_pad // TB,)

    # Pad batch + feature dims directly in bf16 (no f32 intermediate traffic).
    x_p = jnp.zeros((B_pad, NIN_P), jnp.bfloat16).at[:B, :NIN].set(x.astype(jnp.bfloat16))

    out = pl.pallas_call(
        _deep_network_kernel,
        grid=grid,
        in_specs=[
            pl.BlockSpec((TB, NIN_P), lambda i: (i, 0)),      # activations (tiled over batch)
            pl.BlockSpec((W_ROWS, W_COLS), lambda i: (0, 0)),  # packed weights (revisited)
            pl.BlockSpec((1, B_COLS), lambda i: (0, 0)),       # packed biases (revisited)
        ],
        out_specs=pl.BlockSpec((TB, OUT_P), lambda i: (i, 0)),
        out_shape=jax.ShapeDtypeStruct((B_pad, OUT_P), jnp.bfloat16),
        compiler_params=pltpu.CompilerParams(
            dimension_semantics=("parallel",)),
        # TODO(synk): try pltpu.CORE_PARALLEL on v7x if plain "parallel" does not
        # shard the batch grid across both TensorCores.
    )(x_p, wblob, bblob)

    soft_ph = out[:B, :NOUT].astype(jnp.float32)
    vh = out[:B, NOUT:NOUT + 1].astype(jnp.float32)
    return soft_ph, vh


def init_params(key):
    """Deterministic synthetic parameters (shapes from DeepNetwork.__init__)."""
    ks = jax.random.split(key, 20)
    p = {}

    def lin(name, kw, kb, out_f, in_f):
        bound = 1.0 / jnp.sqrt(in_f)
        p[name + "_w"] = jax.random.uniform(kw, (out_f, in_f), jnp.float32, -bound, bound)
        p[name + "_b"] = jax.random.uniform(kb, (out_f,), jnp.float32, -bound, bound)

    lin("lin",   ks[0], ks[1], HID, NIN)
    lin("linp1", ks[2], ks[3], HID, HID)
    lin("linp2", ks[4], ks[5], HID, HID)
    lin("linp3", ks[6], ks[7], NOUT, HID)
    lin("linv1", ks[8], ks[9], HID, HID)
    lin("linv2", ks[10], ks[11], HID, HID)
    lin("linv3", ks[12], ks[13], 1, HID)

    p["bn_gamma"] = jax.random.uniform(ks[14], (HID,), jnp.float32, 0.5, 1.5)
    p["bn_beta"] = jax.random.uniform(ks[15], (HID,), jnp.float32, -0.1, 0.1)
    p["bn_running_mean"] = jax.random.uniform(ks[16], (HID,), jnp.float32, -0.1, 0.1)
    p["bn_running_var"] = jax.random.uniform(ks[17], (HID,), jnp.float32, 0.5, 1.5)
    return p


def _reference_forward(x, params):
    """Pure-jnp f32 reference mirroring the PyTorch forward (eval mode)."""
    if x.ndim == 1:
        x = x[None, :]
    gamma, beta = params["bn_gamma"], params["bn_beta"]
    rmean, rvar = params["bn_running_mean"], params["bn_running_var"]

    def bn(h):
        return (h - rmean) / jnp.sqrt(rvar + BN_EPS) * gamma + beta

    def lin(name, h):
        return h @ params[name + "_w"].T + params[name + "_b"]

    h = jax.nn.relu(bn(lin("lin", x)))
    ph = jax.nn.relu(bn(lin("linp1", h)))
    ph = jax.nn.relu(bn(lin("linp2", ph)))
    ph = lin("linp3", ph)
    soft_ph = jax.nn.softmax(ph, axis=-1)
    vh = jax.nn.relu(bn(lin("linv1", h)))
    vh = jax.nn.relu(bn(lin("linv2", vh)))
    vh = lin("linv3", vh)
    return soft_ph, vh


if __name__ == "__main__":
    key = jax.random.PRNGKey(0)
    k_params, k_x = jax.random.split(key)
    params = init_params(k_params)
    prepared = prepare_params(params)   # fold/transpose/pad/pack/cast once

    B = 8
    x = jax.random.normal(k_x, (B, NIN), jnp.float32)

    fwd = jax.jit(deep_network_forward)
    soft_ph, vh = fwd(x, prepared)
    soft_ph, vh = jax.block_until_ready((soft_ph, vh))

    ref_ph, ref_vh = _reference_forward(x, params)
    assert soft_ph.shape == (B, NOUT) and vh.shape == (B, 1)
    # Exact reciprocal in-kernel; bf16 stored probs -> sum-to-1 to ~3e-3.
    assert jnp.allclose(jnp.sum(soft_ph, axis=-1), 1.0, atol=1e-2)
    # bf16 matmuls (f32 accumulation) + bf16 output store => relaxed tolerance vs f32 ref.
    assert jnp.allclose(soft_ph, ref_ph, atol=3e-2, rtol=3e-2)
    assert jnp.allclose(vh, ref_vh, atol=3e-2, rtol=3e-2)

    print("KERNEL_OK")
</pallas_src>

<mosaic_0001>
module attributes {stable_mosaic.version = 11 : i64} {
  func.func @_deep_network_kernel(%arg0: i32, %arg1: memref<16x128xbf16, #tpu.memory_space<vmem>>, %arg2: memref<1152x512xbf16, #tpu.memory_space<vmem>>, %arg3: memref<1x1408xf32, #tpu.memory_space<vmem>>, %arg4: memref<16x128xbf16, #tpu.memory_space<vmem>>) attributes {dimension_semantics = [#tpu.dimension_semantics<parallel>], iteration_bounds = array<i64: 1>, scalar_prefetch = 0 : i64, scratch_operands = 0 : i64, tpu.core_type = #tpu.core_type<tc>, window_params = [{transform_indices = @transform_0, window_bounds = array<i64: 16, 128>}, {pipeline_mode = #tpu.pipeline_mode<synchronous>, transform_indices = @transform_1, window_bounds = array<i64: 1152, 512>}, {pipeline_mode = #tpu.pipeline_mode<synchronous>, transform_indices = @transform_2, window_bounds = array<i64: 1, 1408>}, {transform_indices = @transform_3, window_bounds = array<i64: 16, 128>}]} {
    %c0 = arith.constant 0 : index
    %c0_0 = arith.constant 0 : index
    %0 = vector.load %arg1[%c0, %c0_0] : memref<16x128xbf16, #tpu.memory_space<vmem>>, vector<16x128xbf16>
    %c0_1 = arith.constant 0 : index
    %c0_2 = arith.constant 0 : index
    %1 = vector.load %arg2[%c0_1, %c0_2] : memref<1152x512xbf16, #tpu.memory_space<vmem>>, vector<128x256xbf16>
    %c0_3 = arith.constant 0 : index
    %c0_4 = arith.constant 0 : index
    %2 = vector.load %arg3[%c0_3, %c0_4] : memref<1x1408xf32, #tpu.memory_space<vmem>>, vector<1x256xf32>
    %cst = arith.constant dense<0.000000e+00> : vector<16x256xf32>
    %3 = tpu.matmul %0, %1, %cst {dimension_numbers = #tpu.dot_dimension_numbers<[1], [0], [0], [1], [0, 0, 1, 1], [], []>} : vector<16x128xbf16>, vector<128x256xbf16>, vector<16x256xf32> -> vector<16x256xf32>
    %4 = vector.broadcast %2 : vector<1x256xf32> to vector<16x256xf32>
    %5 = arith.addf %3, %4 : vector<16x256xf32>
    %cst_5 = arith.constant 0.000000e+00 : f32
    %6 = vector.broadcast %cst_5 : f32 to vector<16x256xf32>
    %7 = arith.maximumf %5, %6 : vector<16x256xf32>
    %8 = arith.truncf %7 : vector<16x256xf32> to vector<16x256xbf16>
    %c128 = arith.constant 128 : index
    %c0_6 = arith.constant 0 : index
    %9 = vector.load %arg2[%c128, %c0_6] : memref<1152x512xbf16, #tpu.memory_space<vmem>>, vector<256x512xbf16>
    %c0_7 = arith.constant 0 : index
    %c256 = arith.constant 256 : index
    %10 = vector.load %arg3[%c0_7, %c256] : memref<1x1408xf32, #tpu.memory_space<vmem>>, vector<1x512xf32>
    %cst_8 = arith.constant dense<0.000000e+00> : vector<16x512xf32>
    %11 = tpu.matmul %8, %9, %cst_8 {dimension_numbers = #tpu.dot_dimension_numbers<[1], [0], [0], [1], [0, 0, 1, 1], [], []>} : vector<16x256xbf16>, vector<256x512xbf16>, vector<16x512xf32> -> vector<16x512xf32>
    %12 = vector.broadcast %10 : vector<1x512xf32> to vector<16x512xf32>
    %13 = arith.addf %11, %12 : vector<16x512xf32>
    %cst_9 = arith.constant 0.000000e+00 : f32
    %14 = vector.broadcast %cst_9 : f32 to vector<16x512xf32>
    %15 = arith.maximumf %13, %14 : vector<16x512xf32>
    %16 = arith.truncf %15 : vector<16x512xf32> to vector<16x512xbf16>
    %17 = vector.extract_strided_slice %16 {offsets = [0, 0], sizes = [16, 256], strides = [1, 1]} : vector<16x512xbf16> to vector<16x256xbf16>
    %18 = vector.extract_strided_slice %16 {offsets = [0, 256], sizes = [16, 256], strides = [1, 1]} : vector<16x512xbf16> to vector<16x256xbf16>
    %c384 = arith.constant 384 : index
    %c0_10 = arith.constant 0 : index
    %19 = vector.load %arg2[%c384, %c0_10] : memref<1152x512xbf16, #tpu.memory_space<vmem>>, vector<256x256xbf16>
    %c0_11 = arith.constant 0 : index
    %c768 = arith.constant 768 : index
    %20 = vector.load %arg3[%c0_11, %c768] : memref<1x1408xf32, #tpu.memory_space<vmem>>, vector<1x256xf32>
    %cst_12 = arith.constant dense<0.000000e+00> : vector<16x256xf32>
    %21 = tpu.matmul %17, %19, %cst_12 {dimension_numbers = #tpu.dot_dimension_numbers<[1], [0], [0], [1], [0, 0, 1, 1], [], []>} : vector<16x256xbf16>, vector<256x256xbf16>, vector<16x256xf32> -> vector<16x256xf32>
    %22 = vector.broadcast %20 : vector<1x256xf32> to vector<16x256xf32>
    %23 = arith.addf %21, %22 : vector<16x256xf32>
    %cst_13 = arith.constant 0.000000e+00 : f32
    %24 = vector.broadcast %cst_13 : f32 to vector<16x256xf32>
    %25 = arith.maximumf %23, %24 : vector<16x256xf32>
    %26 = arith.truncf %25 : vector<16x256xf32> to vector<16x256xbf16>
    %c384_14 = arith.constant 384 : index
    %c256_15 = arith.constant 256 : index
    %27 = vector.load %arg2[%c384_14, %c256_15] : memref<1152x512xbf16, #tpu.memory_space<vmem>>, vector<256x256xbf16>
    %c0_16 = arith.constant 0 : index
    %c1024 = arith.constant 1024 : index
    %28 = vector.load %arg3[%c0_16, %c1024] : memref<1x1408xf32, #tpu.memory_space<vmem>>, vector<1x256xf32>
    %cst_17 = arith.constant dense<0.000000e+00> : vector<16x256xf32>
    %29 = tpu.matmul %18, %27, %cst_17 {dimension_numbers = #tpu.dot_dimension_numbers<[1], [0], [0], [1], [0, 0, 1, 1], [], []>} : vector<16x256xbf16>, vector<256x256xbf16>, vector<16x256xf32> -> vector<16x256xf32>
    %30 = vector.broadcast %28 : vector<1x256xf32> to vector<16x256xf32>
    %31 = arith.addf %29, %30 : vector<16x256xf32>
    %cst_18 = arith.constant 0.000000e+00 : f32
    %32 = vector.broadcast %cst_18 : f32 to vector<16x256xf32>
    %33 = arith.maximumf %31, %32 : vector<16x256xf32>
    %34 = arith.truncf %33 : vector<16x256xf32> to vector<16x256xbf16>
    %35 = tpu.concatenate %26, %34 in 1 : vector<16x256xbf16>, vector<16x256xbf16> -> vector<16x512xbf16>
    %c640 = arith.constant 640 : index
    %c0_19 = arith.constant 0 : index
    %36 = vector.load %arg2[%c640, %c0_19] : memref<1152x512xbf16, #tpu.memory_space<vmem>>, vector<512x128xbf16>
    %cst_20 = arith.constant dense<0.000000e+00> : vector<16x128xf32>
    %37 = tpu.matmul %35, %36, %cst_20 {dimension_numbers = #tpu.dot_dimension_numbers<[1], [0], [0], [1], [0, 0, 1, 1], [], []>} : vector<16x512xbf16>, vector<512x128xbf16>, vector<16x128xf32> -> vector<16x128xf32>
    %c0_21 = arith.constant 0 : index
    %c1280 = arith.constant 1280 : index
    %38 = vector.load %arg3[%c0_21, %c1280] : memref<1x1408xf32, #tpu.memory_space<vmem>>, vector<1x128xf32>
    %39 = vector.broadcast %38 : vector<1x128xf32> to vector<16x128xf32>
    %40 = arith.addf %37, %39 : vector<16x128xf32>
    %41 = tpu.iota {dimensions = array<i32: 1>} : vector<16x128xi32>
    %c5_i32 = arith.constant 5 : i32
    %42 = vector.broadcast %c5_i32 : i32 to vector<16x128xi32>
    %43 = arith.cmpi slt, %41, %42 : vector<16x128xi32>
    %c5_i32_22 = arith.constant 5 : i32
    %44 = vector.broadcast %c5_i32_22 : i32 to vector<16x128xi32>
    %45 = arith.cmpi eq, %41, %44 : vector<16x128xi32>
    %cst_23 = arith.constant -1.000000e+30 : f32
    %46 = vector.broadcast %cst_23 : f32 to vector<16x128xf32>
    %47 = arith.select %43, %40, %46 : vector<16x128xi1>, vector<16x128xf32>
    %cst_24 = arith.constant dense<0xFF800000> : vector<16xf32>
    %48 = vector.multi_reduction <maximumf>, %47, %cst_24 [1] : vector<16x128xf32> to vector<16xf32>
    %49 = vector.shape_cast %48 : vector<16xf32> to vector<16x1xf32>
    %50 = vector.broadcast %49 : vector<16x1xf32> to vector<16x128xf32>
    %51 = arith.subf %47, %50 : vector<16x128xf32>
    %52 = math.exp %51 : vector<16x128xf32>
    %cst_25 = arith.constant dense<0.000000e+00> : vector<16xf32>
    %53 = vector.multi_reduction <add>, %52, %cst_25 [1] : vector<16x128xf32> to vector<16xf32>
    %54 = vector.shape_cast %53 : vector<16xf32> to vector<16x1xf32>
    %55 = tpu.reciprocal %54 : vector<16x1xf32> -> vector<16x1xf32>
    %56 = vector.broadcast %55 : vector<16x1xf32> to vector<16x128xf32>
    %57 = arith.mulf %52, %56 : vector<16x128xf32>
    %cst_26 = arith.constant 0.000000e+00 : f32
    %58 = vector.broadcast %cst_26 : f32 to vector<16x128xf32>
    %59 = arith.select %45, %40, %58 : vector<16x128xi1>, vector<16x128xf32>
    %60 = arith.select %43, %57, %59 : vector<16x128xi1>, vector<16x128xf32>
    %61 = arith.truncf %60 : vector<16x128xf32> to vector<16x128xbf16>
    %c0_27 = arith.constant 0 : index
    %c0_28 = arith.constant 0 : index
    %62 = vector.load %arg4[%c0_27, %c0_28] : memref<16x128xbf16, #tpu.memory_space<vmem>>, vector<16x128xbf16>
    tpu.vector_store %arg4[%c0_27, %c0_28], %61 {strides = array<i32>} : memref<16x128xbf16, #tpu.memory_space<vmem>>, vector<16x128xbf16>,
    return
  }
  func.func @transform_0(%arg0: i32) -> (i32, i32) {
    %c0_i32 = arith.constant 0 : i32
    %c0_i32_0 = arith.constant 0 : i32
    return %arg0, %c0_i32 : i32, i32
  }
  func.func @transform_1(%arg0: i32) -> (i32, i32) {
    %c0_i32 = arith.constant 0 : i32
    %c0_i32_0 = arith.constant 0 : i32
    %c0_i32_1 = arith.constant 0 : i32
    return %c0_i32, %c0_i32_0 : i32, i32
  }
  func.func @transform_2(%arg0: i32) -> (i32, i32) {
    %c0_i32 = arith.constant 0 : i32
    %c0_i32_0 = arith.constant 0 : i32
    %c0_i32_1 = arith.constant 0 : i32
    return %c0_i32, %c0_i32_0 : i32, i32
  }
  func.func @transform_3(%arg0: i32) -> (i32, i32) {
    %c0_i32 = arith.constant 0 : i32
    %c0_i32_0 = arith.constant 0 : i32
    return %arg0, %c0_i32 : i32, i32
  }
}

</mosaic_0001>

<llo_original>
// kernel: deep_network_forward.1
$region0: #{deep_network_forward.1}
  #allocation0 [shape = 'u32[]', space=smem, size = 0x4, offset = 0x4, fixed_abs, tag = 'smem constant byte address 0x4 - core index']
  #allocation1 [shape = 'u32[144,128]{1,0:T(1,128)}', space=vmem, size = 0x12000, scoped, tag = 'internal scratch']
  %s0 = inlined_call_operand.vmem [shape: bf16[16,128], index: 0, kind: input, shape index: {}]
  %s1 = inlined_call_operand.hbm [shape: bf16[1152,512], index: 1, kind: input, shape index: {}]
  %s2 = inlined_call_operand.hbm [shape: f32[1,1408], index: 2, kind: input, shape index: {}]
  %s3 = inlined_call_operand.vmem [shape: bf16[16,128], index: 3, kind: output, shape index: {}]
  %s4 = sld [smem:[#allocation0]]
  $region30: #{deep_network_forward.1} parent=0
    _
  %s6 = ssub.s32 1, %s4
  %s7 = scalar_select 0, %s6, %s4
  $region1: #{deep_network_forward.1} parent=0
    #allocation2 [shape = 'u8[1179648]{0}', space=vmem, size = 0x120000, scoped, tag = 'input window, operand 1, single buffered']
    #allocation3 [shape = 's32[1]{0}', space=sflag, size = 0x4, scoped, tag = 'scoped memory for deep_network_forward.1']
    #allocation4 [shape = 'u8[5632]{0}', space=vmem, size = 0x1800, scoped, tag = 'input window, operand 2, single buffered']
    #allocation5 [shape = 's32[1]{0}', space=sflag, size = 0x4, scoped, tag = 'scoped memory for deep_network_forward.1']
    %8 = vsyncpa [#allocation3], 0
    %9 = vsyncpa [#allocation5], 0
    // Predicated region
    $region2: #{deep_network_forward.1} parent=1 // pred_check
      _
    $region3: #{deep_network_forward.1} parent=1 // pred_check_branch
      %11 = sbr.rel (0) target = $region5
    $region4: #{deep_network_forward.1} parent=1 // pred_region
      _
    $region5: #{deep_network_forward.1} parent=1 // pred_fallthru
      _
    // Predicated region
    $region6: #{deep_network_forward.1} parent=1 // pred_check
      _
    $region7: #{deep_network_forward.1} parent=1 // pred_check_branch
      %13 = sbr.rel (0) target = $region9
    $region8: #{deep_network_forward.1} parent=1 // pred_region
      %s15 = ssub.s32 36864, 36864
      %16 = vsyncadd [#allocation3], %s15
      %s17 = sshll.u32 [#allocation2], 4
      %s18 = int_to_ptr.vmem [resolvable:$true] %s17
      %23 = dma.hbm_to_vmem [thread:$0]  %s1, 36864, %s18, [#allocation3], 256, 256, 16
    $region9: #{deep_network_forward.1} parent=1 // pred_fallthru
      _
    // Predicated region
    $region10: #{deep_network_forward.1} parent=1 // pred_check
      _
    $region11: #{deep_network_forward.1} parent=1 // pred_check_branch
      %25 = sbr.rel (0) target = $region13
    $region12: #{deep_network_forward.1} parent=1 // pred_region
      %s27 = ssub.s32 176, 176
      %28 = vsyncadd [#allocation5], %s27
      %s30 = sshll.u32 [#allocation4], 4
      %s31 = int_to_ptr.vmem [resolvable:$true] %s30
      %33 = dma.hbm_to_vmem [thread:$0]  %s2, 176, %s31, [#allocation5]
    $region13: #{deep_network_forward.1} parent=1 // pred_fallthru
      _
    // Predicated region
    $region14: #{deep_network_forward.1} parent=1 // pred_check
      _
    $region15: #{deep_network_forward.1} parent=1 // pred_check_branch
      %35 = sbr.rel (0) target = $region17
    $region16: #{deep_network_forward.1} parent=1 // pred_region
      %36 = dma.done [#allocation3], 36864
    $region17: #{deep_network_forward.1} parent=1 // pred_fallthru
      _
    // Predicated region
    $region18: #{deep_network_forward.1} parent=1 // pred_check
      _
    $region19: #{deep_network_forward.1} parent=1 // pred_check_branch
      %38 = sbr.rel (0) target = $region21
    $region20: #{deep_network_forward.1} parent=1 // pred_region
      %39 = dma.done [#allocation5], 176
    $region21: #{deep_network_forward.1} parent=1 // pred_fallthru
      _
    %v41 = vld [vmem:[%s0] sm:$0xf]
    %v42 = vld [vmem:[%s0 + $0x4] sm:$0xf]
    %v43 = vld [vmem:[#allocation2] sm:$0xff]
    %v44 = vld [vmem:[#allocation2 + $0x10] sm:$0xff]
    %v45 = vld [vmem:[#allocation2 + $0x20] sm:$0xff]
    %v46 = vld [vmem:[#allocation2 + $0x30] sm:$0xff]
    %v47 = vld [vmem:[#allocation2 + $0x40] sm:$0xff]
    %v48 = vld [vmem:[#allocation2 + $0x50] sm:$0xff]
    %v49 = vld [vmem:[#allocation2 + $0x60] sm:$0xff]
    %v50 = vld [vmem:[#allocation2 + $0x70] sm:$0xff]
    %v51 = vld [vmem:[#allocation2 + $0x80] sm:$0xff]
    %v52 = vld [vmem:[#allocation2 + $0x90] sm:$0xff]
    %v53 = vld [vmem:[#allocation2 + $0xa0] sm:$0xff]
    %v54 = vld [vmem:[#allocation2 + $0xb0] sm:$0xff]
    %v55 = vld [vmem:[#allocation2 + $0xc0] sm:$0xff]
    %v56 = vld [vmem:[#allocation2 + $0xd0] sm:$0xff]
    %v57 = vld [vmem:[#allocation2 + $0xe0] sm:$0xff]
    %v58 = vld [vmem:[#allocation2 + $0xf0] sm:$0xff]
    %v59 = vld [vmem:[#allocation4] sm:$0x3]
    %v61 = vlaneseq
    %v62 = vshrl.u32 %v61, 7
    %v63 = vsub.s32 0, %v62
    %v64 = vrot.slane %v59, %v63
    %v65 = vlaneseq
    %v66 = vshrl.u32 %v65, 7
    %v67 = vsub.s32 1, %v66
    %v68 = vrot.slane %v59, %v67
    %v73 = vunpack.c.l.b16 %v41
    %v74 = vunpack.c.l.b16 %v42
    %v75 = vpack.c.b16 %v74, %v73
    %v93 = vunpack.c.l.b16 %v43
    %v94 = vunpack.c.h.b16 %v43
    %v95 = vunpack.c.l.b16 %v44
    %v96 = vunpack.c.h.b16 %v44
    %v97 = vunpack.c.l.b16 %v45
    %v98 = vunpack.c.h.b16 %v45
    %v99 = vunpack.c.l.b16 %v46
    %v100 = vunpack.c.h.b16 %v46
    %v101 = vunpack.c.l.b16 %v47
    %v102 = vunpack.c.h.b16 %v47
    %v103 = vunpack.c.l.b16 %v48
    %v104 = vunpack.c.h.b16 %v48
    %v105 = vunpack.c.l.b16 %v49
    %v106 = vunpack.c.h.b16 %v49
    %v107 = vunpack.c.l.b16 %v50
    %v108 = vunpack.c.h.b16 %v50
    %v109 = vunpack.c.l.b16 %v51
    %v110 = vunpack.c.h.b16 %v51
    %v111 = vunpack.c.l.b16 %v52
    %v112 = vunpack.c.h.b16 %v52
    %v113 = vunpack.c.l.b16 %v53
    %v114 = vunpack.c.h.b16 %v53
    %v115 = vunpack.c.l.b16 %v54
    %v116 = vunpack.c.h.b16 %v54
    %v117 = vunpack.c.l.b16 %v55
    %v118 = vunpack.c.h.b16 %v55
    %v119 = vunpack.c.l.b16 %v56
    %v120 = vunpack.c.h.b16 %v56
    %v121 = vunpack.c.l.b16 %v57
    %v122 = vunpack.c.h.b16 %v57
    %v123 = vunpack.c.l.b16 %v58
    %v124 = vunpack.c.h.b16 %v58
    %v125 = vpack.c.b16 %v95, %v93
    %v126 = vpack.c.b16 %v96, %v94
    %v127 = vpack.c.b16 %v99, %v97
    %v128 = vpack.c.b16 %v100, %v98
    %v129 = vpack.c.b16 %v103, %v101
    %v130 = vpack.c.b16 %v104, %v102
    %v131 = vpack.c.b16 %v107, %v105
    %v132 = vpack.c.b16 %v108, %v106
    %v133 = vpack.c.b16 %v111, %v109
    %v134 = vpack.c.b16 %v112, %v110
    %v135 = vpack.c.b16 %v115, %v113
    %v136 = vpack.c.b16 %v116, %v114
    %v137 = vpack.c.b16 %v119, %v117
    %v138 = vpack.c.b16 %v120, %v118
    %v139 = vpack.c.b16 %v123, %v121
    %v140 = vpack.c.b16 %v124, %v122
    %157 = vmatprep.subr.bf16.mxu0 %v126
    %158 = vmatpush1.bf16.msra.mxu0 %v125
    %159 = vmatprep.subr.bf16.mxu0 %v128
    %160 = vmatpush1.bf16.msra.mxu0 %v127
    %161 = vmatprep.subr.bf16.mxu0 %v130
    %162 = vmatpush1.bf16.msra.mxu0 %v129
    %163 = vmatprep.subr.bf16.mxu0 %v132
    %164 = vmatpush1.bf16.msra.mxu0 %v131
    %165 = vmatprep.subr.bf16.mxu0 %v134
    %166 = vmatpush1.bf16.msra.mxu0 %v133
    %167 = vmatprep.subr.bf16.mxu0 %v136
    %168 = vmatpush1.bf16.msra.mxu0 %v135
    %169 = vmatprep.subr.bf16.mxu0 %v138
    %170 = vmatpush1.bf16.msra.mxu0 %v137
    %171 = vmatprep.subr.bf16.mxu0 %v140
    %172 = vmatpush1.bf16.msra.mxu0 %v139
    %173 = vmatprep.subr.bf16.mxu0 0
    %174 = vmatpush1.bf16.msra.mxu0 0
    %175 = vmatprep.subr.bf16.mxu0 0
    %176 = vmatpush1.bf16.msra.mxu0 0
    %177 = vmatprep.subr.bf16.mxu0 0
    %178 = vmatpush1.bf16.msra.mxu0 0
    %179 = vmatprep.subr.bf16.mxu0 0
    %180 = vmatpush1.bf16.msra.mxu0 0
    %181 = vmatprep.subr.bf16.mxu0 0
    %182 = vmatpush1.bf16.msra.mxu0 0
    %183 = vmatprep.subr.bf16.mxu0 0
    %184 = vmatpush1.bf16.msra.mxu0 0
    %185 = vmatprep.subr.bf16.mxu0 0
    %186 = vmatpush1.bf16.msra.mxu0 0
    %187 = vmatprep.subr.bf16.mxu0 0
    %188 = vmatpush1.bf16.msra.mxu0 0
    %189 = vmatprep.mubr.bf16.mxu0 0
    %190 = vmatmul.mubr.bf16.gmra.mrb[0].mxu0 %v75
    %v191 = vpop.f32.mrb[0].mxu0
    %v192 = vadd.f32 %v64, %v191
    %v193 = vpop.f32.mrb[0].mxu0
    %v194 = vadd.f32 %v68, %v193
    %v195 = vpop.f32.mrb[0].mxu0
    %v196 = vadd.f32 %v64, %v195
    %v197 = vpop.f32.mrb[0].mxu0
    %v198 = vadd.f32 %v68, %v197
    %199 = vdwg.mxu0
    %v200 = vmax.f32 %v192, 0.0
    %v201 = vmax.f32 %v194, 0.0
    %v202 = vmax.f32 %v196, 0.0
    %v203 = vmax.f32 %v198, 0.0
    %v204 = vpack.c.bf16 %v202, %v200
    %v205 = vpack.c.bf16 %v203, %v201
    %v206 = vld [vmem:[#allocation2 + $0x100] sm:$0xff]
    %v207 = vld [vmem:[#allocation2 + $0x108] sm:$0xff]
    %v208 = vld [vmem:[#allocation2 + $0x110] sm:$0xff]
    %v209 = vld [vmem:[#allocation2 + $0x118] sm:$0xff]
    %v210 = vld [vmem:[#allocation2 + $0x120] sm:$0xff]
    %v211 = vld [vmem:[#allocation2 + $0x128] sm:$0xff]
    %v212 = vld [vmem:[#allocation2 + $0x130] sm:$0xff]
    %v213 = vld [vmem:[#allocation2 + $0x138] sm:$0xff]
    %v214 = vld [vmem:[#allocation2 + $0x140] sm:$0xff]
    %v215 = vld [vmem:[#allocation2 + $0x148] sm:$0xff]
    %v216 = vld [vmem:[#allocation2 + $0x150] sm:$0xff]
    %v217 = vld [vmem:[#allocation2 + $0x158] sm:$0xff]
    %v218 = vld [vmem:[#allocation2 + $0x160] sm:$0xff]
    %v219 = vld [vmem:[#allocation2 + $0x168] sm:$0xff]
    %v220 = vld [vmem:[#allocation2 + $0x170] sm:$0xff]
    %v221 = vld [vmem:[#allocation2 + $0x178] sm:$0xff]
    %v222 = vld [vmem:[#allocation2 + $0x180] sm:$0xff]
    %v223 = vld [vmem:[#allocation2 + $0x188] sm:$0xff]
    %v224 = vld [vmem:[#allocation2 + $0x190] sm:$0xff]
    %v225 = vld [vmem:[#allocation2 + $0x198] sm:$0xff]
    %v226 = vld [vmem:[#allocation2 + $0x1a0] sm:$0xff]
    %v227 = vld [vmem:[#allocation2 + $0x1a8] sm:$0xff]
    %v228 = vld [vmem:[#allocation2 + $0x1b0] sm:$0xff]
    %v229 = vld [vmem:[#allocation2 + $0x1b8] sm:$0xff]
    %v230 = vld [vmem:[#allocation2 + $0x1c0] sm:$0xff]
    %v231 = vld [vmem:[#allocation2 + $0x1c8] sm:$0xff]
    %v232 = vld [vmem:[#allocation2 + $0x1d0] sm:$0xff]
    %v233 = vld [vmem:[#allocation2 + $0x1d8] sm:$0xff]
    %v234 = vld [vmem:[#allocation2 + $0x1e0] sm:$0xff]
    %v235 = vld [vmem:[#allocation2 + $0x1e8] sm:$0xff]
    %v236 = vld [vmem:[#allocation2 + $0x1f0] sm:$0xff]
    %v237 = vld [vmem:[#allocation2 + $0x1f8] sm:$0xff]
    %v238 = vld [vmem:[#allocation2 + $0x200] sm:$0xff]
    %v239 = vld [vmem:[#allocation2 + $0x208] sm:$0xff]
    %v240 = vld [vmem:[#allocation2 + $0x210] sm:$0xff]
    %v241 = vld [vmem:[#allocation2 + $0x218] sm:$0xff]
    %v242 = vld [vmem:[#allocation2 + $0x220] sm:$0xff]
    %v243 = vld [vmem:[#allocation2 + $0x228] sm:$0xff]
    %v244 = vld [vmem:[#allocation2 + $0x230] sm:$0xff]
    %v245 = vld [vmem:[#allocation2 + $0x238] sm:$0xff]
    %v246 = vld [vmem:[#allocation2 + $0x240] sm:$0xff]
    %v247 = vld [vmem:[#allocation2 + $0x248] sm:$0xff]
    %v248 = vld [vmem:[#allocation2 + $0x250] sm:$0xff]
    %v249 = vld [vmem:[#allocation2 + $0x258] sm:$0xff]
    %v250 = vld [vmem:[#allocation2 + $0x260] sm:$0xff]
    %v251 = vld [vmem:[#allocation2 + $0x268] sm:$0xff]
    %v252 = vld [vmem:[#allocation2 + $0x270] sm:$0xff]
    %v253 = vld [vmem:[#allocation2 + $0x278] sm:$0xff]
    %v254 = vld [vmem:[#allocation2 + $0x280] sm:$0xff]
    %v255 = vld [vmem:[#allocation2 + $0x288] sm:$0xff]
    %v256 = vld [vmem:[#allocation2 + $0x290] sm:$0xff]
    %v257 = vld [vmem:[#allocation2 + $0x298] sm:$0xff]
    %v258 = vld [vmem:[#allocation2 + $0x2a0] sm:$0xff]
    %v259 = vld [vmem:[#allocation2 + $0x2a8] sm:$0xff]
    %v260 = vld [vmem:[#allocation2 + $0x2b0] sm:$0xff]
    %v261 = vld [vmem:[#allocation2 + $0x2b8] sm:$0xff]
    %v262 = vld [vmem:[#allocation2 + $0x2c0] sm:$0xff]
    %v263 = vld [vmem:[#allocation2 + $0x2c8] sm:$0xff]
    %v264 = vld [vmem:[#allocation2 + $0x2d0] sm:$0xff]
    %v265 = vld [vmem:[#allocation2 + $0x2d8] sm:$0xff]
    %v266 = vld [vmem:[#allocation2 + $0x2e0] sm:$0xff]
    %v267 = vld [vmem:[#allocation2 + $0x2e8] sm:$0xff]
    %v268 = vld [vmem:[#allocation2 + $0x2f0] sm:$0xff]
    %v269 = vld [vmem:[#allocation2 + $0x2f8] sm:$0xff]
    %v270 = vld [vmem:[#allocation4 + $0x2] sm:$0xf]
    %v272 = vlaneseq
    %v273 = vshrl.u32 %v272, 7
    %v274 = vsub.s32 0, %v273
    %v275 = vrot.slane %v270, %v274
    %v276 = vlaneseq
    %v277 = vshrl.u32 %v276, 7
    %v278 = vsub.s32 1, %v277
    %v279 = vrot.slane %v270, %v278
    %v280 = vlaneseq
    %v281 = vshrl.u32 %v280, 7
    %v282 = vsub.s32 2, %v281
    %v283 = vrot.slane %v270, %v282
    %v284 = vlaneseq
    %v285 = vshrl.u32 %v284, 7
    %v286 = vsub.s32 3, %v285
    %v287 = vrot.slane %v270, %v286
    %v356 = vunpack.c.l.b16 %v206
    %v357 = vunpack.c.h.b16 %v206
    %v358 = vunpack.c.l.b16 %v207
    %v359 = vunpack.c.h.b16 %v207
    %v360 = vunpack.c.l.b16 %v208
    %v361 = vunpack.c.h.b16 %v208
    %v362 = vunpack.c.l.b16 %v209
    %v363 = vunpack.c.h.b16 %v209
    %v364 = vunpack.c.l.b16 %v210
    %v365 = vunpack.c.h.b16 %v210
    %v366 = vunpack.c.l.b16 %v211
    %v367 = vunpack.c.h.b16 %v211
    %v368 = vunpack.c.l.b16 %v212
    %v369 = vunpack.c.h.b16 %v212
    %v370 = vunpack.c.l.b16 %v213
    %v371 = vunpack.c.h.b16 %v213
    %v372 = vunpack.c.l.b16 %v214
    %v373 = vunpack.c.h.b16 %v214
    %v374 = vunpack.c.l.b16 %v215
    %v375 = vunpack.c.h.b16 %v215
    %v376 = vunpack.c.l.b16 %v216
    %v377 = vunpack.c.h.b16 %v216
    %v378 = vunpack.c.l.b16 %v217
    %v379 = vunpack.c.h.b16 %v217
    %v380 = vunpack.c.l.b16 %v218
    %v381 = vunpack.c.h.b16 %v218
    %v382 = vunpack.c.l.b16 %v219
    %v383 = vunpack.c.h.b16 %v219
    %v384 = vunpack.c.l.b16 %v220
    %v385 = vunpack.c.h.b16 %v220
    %v386 = vunpack.c.l.b16 %v221
    %v387 = vunpack.c.h.b16 %v221
    %v388 = vunpack.c.l.b16 %v222
    %v389 = vunpack.c.h.b16 %v222
    %v390 = vunpack.c.l.b16 %v223
    %v391 = vunpack.c.h.b16 %v223
    %v392 = vunpack.c.l.b16 %v224
    %v393 = vunpack.c.h.b16 %v224
    %v394 = vunpack.c.l.b16 %v225
    %v395 = vunpack.c.h.b16 %v225
    %v396 = vunpack.c.l.b16 %v226
    %v397 = vunpack.c.h.b16 %v226
    %v398 = vunpack.c.l.b16 %v227
    %v399 = vunpack.c.h.b16 %v227
    %v400 = vunpack.c.l.b16 %v228
    %v401 = vunpack.c.h.b16 %v228
    %v402 = vunpack.c.l.b16 %v229
    %v403 = vunpack.c.h.b16 %v229
    %v404 = vunpack.c.l.b16 %v230
    %v405 = vunpack.c.h.b16 %v230
    %v406 = vunpack.c.l.b16 %v231
    %v407 = vunpack.c.h.b16 %v231
    %v408 = vunpack.c.l.b16 %v232
    %v409 = vunpack.c.h.b16 %v232
    %v410 = vunpack.c.l.b16 %v233
    %v411 = vunpack.c.h.b16 %v233
    %v412 = vunpack.c.l.b16 %v234
    %v413 = vunpack.c.h.b16 %v234
    %v414 = vunpack.c.l.b16 %v235
    %v415 = vunpack.c.h.b16 %v235
    %v416 = vunpack.c.l.b16 %v236
    %v417 = vunpack.c.h.b16 %v236
    %v418 = vunpack.c.l.b16 %v237
    %v419 = vunpack.c.h.b16 %v237
    %v420 = vunpack.c.l.b16 %v238
    %v421 = vunpack.c.h.b16 %v238
    %v422 = vunpack.c.l.b16 %v239
    %v423 = vunpack.c.h.b16 %v239
    %v424 = vunpack.c.l.b16 %v240
    %v425 = vunpack.c.h.b16 %v240
    %v426 = vunpack.c.l.b16 %v241
    %v427 = vunpack.c.h.b16 %v241
    %v428 = vunpack.c.l.b16 %v242
    %v429 = vunpack.c.h.b16 %v242
    %v430 = vunpack.c.l.b16 %v243
    %v431 = vunpack.c.h.b16 %v243
    %v432 = vunpack.c.l.b16 %v244
    %v433 = vunpack.c.h.b16 %v244
    %v434 = vunpack.c.l.b16 %v245
    %v435 = vunpack.c.h.b16 %v245
    %v436 = vunpack.c.l.b16 %v246
    %v437 = vunpack.c.h.b16 %v246
    %v438 = vunpack.c.l.b16 %v247
    %v439 = vunpack.c.h.b16 %v247
    %v440 = vunpack.c.l.b16 %v248
    %v441 = vunpack.c.h.b16 %v248
    %v442 = vunpack.c.l.b16 %v249
    %v443 = vunpack.c.h.b16 %v249
    %v444 = vunpack.c.l.b16 %v250
    %v445 = vunpack.c.h.b16 %v250
    %v446 = vunpack.c.l.b16 %v251
    %v447 = vunpack.c.h.b16 %v251
    %v448 = vunpack.c.l.b16 %v252
    %v449 = vunpack.c.h.b16 %v252
    %v450 = vunpack.c.l.b16 %v253
    %v451 = vunpack.c.h.b16 %v253
    %v452 = vunpack.c.l.b16 %v254
    %v453 = vunpack.c.h.b16 %v254
    %v454 = vunpack.c.l.b16 %v255
    %v455 = vunpack.c.h.b16 %v255
    %v456 = vunpack.c.l.b16 %v256
    %v457 = vunpack.c.h.b16 %v256
    %v458 = vunpack.c.l.b16 %v257
    %v459 = vunpack.c.h.b16 %v257
    %v460 = vunpack.c.l.b16 %v258
    %v461 = vunpack.c.h.b16 %v258
    %v462 = vunpack.c.l.b16 %v259
    %v463 = vunpack.c.h.b16 %v259
    %v464 = vunpack.c.l.b16 %v260
    %v465 = vunpack.c.h.b16 %v260
    %v466 = vunpack.c.l.b16 %v261
    %v467 = vunpack.c.h.b16 %v261
    %v468 = vunpack.c.l.b16 %v262
    %v469 = vunpack.c.h.b16 %v262
    %v470 = vunpack.c.l.b16 %v263
    %v471 = vunpack.c.h.b16 %v263
    %v472 = vunpack.c.l.b16 %v264
    %v473 = vunpack.c.h.b16 %v264
    %v474 = vunpack.c.l.b16 %v265
    %v475 = vunpack.c.h.b16 %v265
    %v476 = vunpack.c.l.b16 %v266
    %v477 = vunpack.c.h.b16 %v266
    %v478 = vunpack.c.l.b16 %v267
    %v479 = vunpack.c.h.b16 %v267
    %v480 = vunpack.c.l.b16 %v268
    %v481 = vunpack.c.h.b16 %v268
    %v482 = vunpack.c.l.b16 %v269
    %v483 = vunpack.c.h.b16 %v269
    %v484 = vpack.c.b16 %v360, %v356
    %v485 = vpack.c.b16 %v361, %v357
    %v486 = vpack.c.b16 %v362, %v358
    %v487 = vpack.c.b16 %v363, %v359
    %v488 = vpack.c.b16 %v368, %v364
    %v489 = vpack.c.b16 %v369, %v365
    %v490 = vpack.c.b16 %v370, %v366
    %v491 = vpack.c.b16 %v371, %v367
    %v492 = vpack.c.b16 %v376, %v372
    %v493 = vpack.c.b16 %v377, %v373
    %v494 = vpack.c.b16 %v378, %v374
    %v495 = vpack.c.b16 %v379, %v375
    %v496 = vpack.c.b16 %v384, %v380
    %v497 = vpack.c.b16 %v385, %v381
    %v498 = vpack.c.b16 %v386, %v382
    %v499 = vpack.c.b16 %v387, %v383
    %v500 = vpack.c.b16 %v392, %v388
    %v501 = vpack.c.b16 %v393, %v389
    %v502 = vpack.c.b16 %v394, %v390
    %v503 = vpack.c.b16 %v395, %v391
    %v504 = vpack.c.b16 %v400, %v396
    %v505 = vpack.c.b16 %v401, %v397
    %v506 = vpack.c.b16 %v402, %v398
    %v507 = vpack.c.b16 %v403, %v399
    %v508 = vpack.c.b16 %v408, %v404
    %v509 = vpack.c.b16 %v409, %v405
    %v510 = vpack.c.b16 %v410, %v406
    %v511 = vpack.c.b16 %v411, %v407
    %v512 = vpack.c.b16 %v416, %v412
    %v513 = vpack.c.b16 %v417, %v413
    %v514 = vpack.c.b16 %v418, %v414
    %v515 = vpack.c.b16 %v419, %v415
    %v516 = vpack.c.b16 %v424, %v420
    %v517 = vpack.c.b16 %v425, %v421
    %v518 = vpack.c.b16 %v426, %v422
    %v519 = vpack.c.b16 %v427, %v423
    %v520 = vpack.c.b16 %v432, %v428
    %v521 = vpack.c.b16 %v433, %v429
    %v522 = vpack.c.b16 %v434, %v430
    %v523 = vpack.c.b16 %v435, %v431
    %v524 = vpack.c.b16 %v440, %v436
    %v525 = vpack.c.b16 %v441, %v437
    %v526 = vpack.c.b16 %v442, %v438
    %v527 = vpack.c.b16 %v443, %v439
    %v528 = vpack.c.b16 %v448, %v444
    %v529 = vpack.c.b16 %v449, %v445
    %v530 = vpack.c.b16 %v450, %v446
    %v531 = vpack.c.b16 %v451, %v447
    %v532 = vpack.c.b16 %v456, %v452
    %v533 = vpack.c.b16 %v457, %v453
    %v534 = vpack.c.b16 %v458, %v454
    %v535 = vpack.c.b16 %v459, %v455
    %v536 = vpack.c.b16 %v464, %v460
    %v537 = vpack.c.b16 %v465, %v461
    %v538 = vpack.c.b16 %v466, %v462
    %v539 = vpack.c.b16 %v467, %v463
    %v540 = vpack.c.b16 %v472, %v468
    %v541 = vpack.c.b16 %v473, %v469
    %v542 = vpack.c.b16 %v474, %v470
    %v543 = vpack.c.b16 %v475, %v471
    %v544 = vpack.c.b16 %v480, %v476
    %v545 = vpack.c.b16 %v481, %v477
    %v546 = vpack.c.b16 %v482, %v478
    %v547 = vpack.c.b16 %v483, %v479
    %612 = vmatprep.subr.bf16.mxu0 %v485
    %613 = vmatpush1.bf16.msra.mxu0 %v484
    %614 = vmatprep.subr.bf16.mxu0 %v489
    %615 = vmatpush1.bf16.msra.mxu0 %v488
    %616 = vmatprep.subr.bf16.mxu0 %v493
    %617 = vmatpush1.bf16.msra.mxu0 %v492
    %618 = vmatprep.subr.bf16.mxu0 %v497
    %619 = vmatpush1.bf16.msra.mxu0 %v496
    %620 = vmatprep.subr.bf16.mxu0 %v501
    %621 = vmatpush1.bf16.msra.mxu0 %v500
    %622 = vmatprep.subr.bf16.mxu0 %v505
    %623 = vmatpush1.bf16.msra.mxu0 %v504
    %624 = vmatprep.subr.bf16.mxu0 %v509
    %625 = vmatpush1.bf16.msra.mxu0 %v508
    %626 = vmatprep.subr.bf16.mxu0 %v513
    %627 = vmatpush1.bf16.msra.mxu0 %v512
    %628 = vmatprep.subr.bf16.mxu0 %v517
    %629 = vmatpush1.bf16.msra.mxu0 %v516
    %630 = vmatprep.subr.bf16.mxu0 %v521
    %631 = vmatpush1.bf16.msra.mxu0 %v520
    %632 = vmatprep.subr.bf16.mxu0 %v525
    %633 = vmatpush1.bf16.msra.mxu0 %v524
    %634 = vmatprep.subr.bf16.mxu0 %v529
    %635 = vmatpush1.bf16.msra.mxu0 %v528
    %636 = vmatprep.subr.bf16.mxu0 %v533
    %637 = vmatpush1.bf16.msra.mxu0 %v532
    %638 = vmatprep.subr.bf16.mxu0 %v537
    %639 = vmatpush1.bf16.msra.mxu0 %v536
    %640 = vmatprep.subr.bf16.mxu0 %v541
    %641 = vmatpush1.bf16.msra.mxu0 %v540
    %642 = vmatprep.subr.bf16.mxu0 %v545
    %643 = vmatpush1.bf16.msra.mxu0 %v544
    %644 = vmatprep.mubr.bf16.mxu0 %v205
    %645 = vmatmul.mubr.bf16.gmra.mrb[0].mxu0 %v204
    %v646 = vpop.f32.mrb[0].mxu0
    %v647 = vadd.f32 %v275, %v646
    %v648 = vpop.f32.mrb[0].mxu0
    %v649 = vadd.f32 %v279, %v648
    %v650 = vpop.f32.mrb[0].mxu0
    %v651 = vadd.f32 %v275, %v650
    %v652 = vpop.f32.mrb[0].mxu0
    %v653 = vadd.f32 %v279, %v652
    %654 = vdwg.mxu0
    %655 = vmatprep.subr.bf16.mxu0 %v487
    %656 = vmatpush1.bf16.msra.mxu0 %v486
    %657 = vmatprep.subr.bf16.mxu0 %v491
    %658 = vmatpush1.bf16.msra.mxu0 %v490
    %659 = vmatprep.subr.bf16.mxu0 %v495
    %660 = vmatpush1.bf16.msra.mxu0 %v494
    %661 = vmatprep.subr.bf16.mxu0 %v499
    %662 = vmatpush1.bf16.msra.mxu0 %v498
    %663 = vmatprep.subr.bf16.mxu0 %v503
    %664 = vmatpush1.bf16.msra.mxu0 %v502
    %665 = vmatprep.subr.bf16.mxu0 %v507
    %666 = vmatpush1.bf16.msra.mxu0 %v506
    %667 = vmatprep.subr.bf16.mxu0 %v511
    %668 = vmatpush1.bf16.msra.mxu0 %v510
    %669 = vmatprep.subr.bf16.mxu0 %v515
    %670 = vmatpush1.bf16.msra.mxu0 %v514
    %671 = vmatprep.subr.bf16.mxu0 %v519
    %672 = vmatpush1.bf16.msra.mxu0 %v518
    %673 = vmatprep.subr.bf16.mxu0 %v523
    %674 = vmatpush1.bf16.msra.mxu0 %v522
    %675 = vmatprep.subr.bf16.mxu0 %v527
    %676 = vmatpush1.bf16.msra.mxu0 %v526
    %677 = vmatprep.subr.bf16.mxu0 %v531
    %678 = vmatpush1.bf16.msra.mxu0 %v530
    %679 = vmatprep.subr.bf16.mxu0 %v535
    %680 = vmatpush1.bf16.msra.mxu0 %v534
    %681 = vmatprep.subr.bf16.mxu0 %v539
    %682 = vmatpush1.bf16.msra.mxu0 %v538
    %683 = vmatprep.subr.bf16.mxu0 %v543
    %684 = vmatpush1.bf16.msra.mxu0 %v542
    %685 = vmatprep.subr.bf16.mxu0 %v547
    %686 = vmatpush1.bf16.msra.mxu0 %v546
    %687 = vmatprep.mubr.bf16.mxu0 %v205
    %688 = vmatmul.mubr.bf16.gmra.mrb[0].mxu0 %v204
    %v689 = vpop.f32.mrb[0].mxu0
    %v690 = vadd.f32 %v283, %v689
    %v691 = vpop.f32.mrb[0].mxu0
    %v692 = vadd.f32 %v287, %v691
    %v693 = vpop.f32.mrb[0].mxu0
    %v694 = vadd.f32 %v283, %v693
    %v695 = vpop.f32.mrb[0].mxu0
    %v696 = vadd.f32 %v287, %v695
    %697 = vdwg.mxu0
    %v698 = vmax.f32 %v647, 0.0
    %v699 = vmax.f32 %v649, 0.0
    %v700 = vmax.f32 %v690, 0.0
    %v701 = vmax.f32 %v692, 0.0
    %v702 = vmax.f32 %v651, 0.0
    %v703 = vmax.f32 %v653, 0.0
    %v704 = vmax.f32 %v694, 0.0
    %v705 = vmax.f32 %v696, 0.0
    %v706 = vpack.c.bf16 %v702, %v698
    %v707 = vpack.c.bf16 %v703, %v699
    %v708 = vpack.c.bf16 %v704, %v700
    %v709 = vpack.c.bf16 %v705, %v701
    %v710 = vld [vmem:[#allocation2 + $0x300] sm:$0xff]
    %v711 = vld [vmem:[#allocation2 + $0x310] sm:$0xff]
    %v712 = vld [vmem:[#allocation2 + $0x320] sm:$0xff]
    %v713 = vld [vmem:[#allocation2 + $0x330] sm:$0xff]
    %v714 = vld [vmem:[#allocation2 + $0x340] sm:$0xff]
    %v715 = vld [vmem:[#allocation2 + $0x350] sm:$0xff]
    %v716 = vld [vmem:[#allocation2 + $0x360] sm:$0xff]
    %v717 = vld [vmem:[#allocation2 + $0x370] sm:$0xff]
    %v718 = vld [vmem:[#allocation2 + $0x380] sm:$0xff]
    %v719 = vld [vmem:[#allocation2 + $0x390] sm:$0xff]
    %v720 = vld [vmem:[#allocation2 + $0x3a0] sm:$0xff]
    %v721 = vld [vmem:[#allocation2 + $0x3b0] sm:$0xff]
    %v722 = vld [vmem:[#allocation2 + $0x3c0] sm:$0xff]
    %v723 = vld [vmem:[#allocation2 + $0x3d0] sm:$0xff]
    %v724 = vld [vmem:[#allocation2 + $0x3e0] sm:$0xff]
    %v725 = vld [vmem:[#allocation2 + $0x3f0] sm:$0xff]
    %v726 = vld [vmem:[#allocation2 + $0x400] sm:$0xff]
    %v727 = vld [vmem:[#allocation2 + $0x410] sm:$0xff]
    %v728 = vld [vmem:[#allocation2 + $0x420] sm:$0xff]
    %v729 = vld [vmem:[#allocation2 + $0x430] sm:$0xff]
    %v730 = vld [vmem:[#allocation2 + $0x440] sm:$0xff]
    %v731 = vld [vmem:[#allocation2 + $0x450] sm:$0xff]
    %v732 = vld [vmem:[#allocation2 + $0x460] sm:$0xff]
    %v733 = vld [vmem:[#allocation2 + $0x470] sm:$0xff]
    %v734 = vld [vmem:[#allocation2 + $0x480] sm:$0xff]
    %v735 = vld [vmem:[#allocation2 + $0x490] sm:$0xff]
    %v736 = vld [vmem:[#allocation2 + $0x4a0] sm:$0xff]
    %v737 = vld [vmem:[#allocation2 + $0x4b0] sm:$0xff]
    %v738 = vld [vmem:[#allocation2 + $0x4c0] sm:$0xff]
    %v739 = vld [vmem:[#allocation2 + $0x4d0] sm:$0xff]
    %v740 = vld [vmem:[#allocation2 + $0x4e0] sm:$0xff]
    %v741 = vld [vmem:[#allocation2 + $0x4f0] sm:$0xff]
    %v742 = vld [vmem:[#allocation4 + $0x6] sm:$0x3]
    %v744 = vlaneseq
    %v745 = vshrl.u32 %v744, 7
    %v746 = vsub.s32 0, %v745
    %v747 = vrot.slane %v742, %v746
    %v748 = vlaneseq
    %v749 = vshrl.u32 %v748, 7
    %v750 = vsub.s32 1, %v749
    %v751 = vrot.slane %v742, %v750
    %v786 = vunpack.c.l.b16 %v710
    %v787 = vunpack.c.h.b16 %v710
    %v788 = vunpack.c.l.b16 %v711
    %v789 = vunpack.c.h.b16 %v711
    %v790 = vunpack.c.l.b16 %v712
    %v791 = vunpack.c.h.b16 %v712
    %v792 = vunpack.c.l.b16 %v713
    %v793 = vunpack.c.h.b16 %v713
    %v794 = vunpack.c.l.b16 %v714
    %v795 = vunpack.c.h.b16 %v714
    %v796 = vunpack.c.l.b16 %v715
    %v797 = vunpack.c.h.b16 %v715
    %v798 = vunpack.c.l.b16 %v716
    %v799 = vunpack.c.h.b16 %v716
    %v800 = vunpack.c.l.b16 %v717
    %v801 = vunpack.c.h.b16 %v717
    %v802 = vunpack.c.l.b16 %v718
    %v803 = vunpack.c.h.b16 %v718
    %v804 = vunpack.c.l.b16 %v719
    %v805 = vunpack.c.h.b16 %v719
    %v806 = vunpack.c.l.b16 %v720
    %v807 = vunpack.c.h.b16 %v720
    %v808 = vunpack.c.l.b16 %v721
    %v809 = vunpack.c.h.b16 %v721
    %v810 = vunpack.c.l.b16 %v722
    %v811 = vunpack.c.h.b16 %v722
    %v812 = vunpack.c.l.b16 %v723
    %v813 = vunpack.c.h.b16 %v723
    %v814 = vunpack.c.l.b16 %v724
    %v815 = vunpack.c.h.b16 %v724
    %v816 = vunpack.c.l.b16 %v725
    %v817 = vunpack.c.h.b16 %v725
    %v818 = vunpack.c.l.b16 %v726
    %v819 = vunpack.c.h.b16 %v726
    %v820 = vunpack.c.l.b16 %v727
    %v821 = vunpack.c.h.b16 %v727
    %v822 = vunpack.c.l.b16 %v728
    %v823 = vunpack.c.h.b16 %v728
    %v824 = vunpack.c.l.b16 %v729
    %v825 = vunpack.c.h.b16 %v729
    %v826 = vunpack.c.l.b16 %v730
    %v827 = vunpack.c.h.b16 %v730
    %v828 = vunpack.c.l.b16 %v731
    %v829 = vunpack.c.h.b16 %v731
    %v830 = vunpack.c.l.b16 %v732
    %v831 = vunpack.c.h.b16 %v732
    %v832 = vunpack.c.l.b16 %v733
    %v833 = vunpack.c.h.b16 %v733
    %v834 = vunpack.c.l.b16 %v734
    %v835 = vunpack.c.h.b16 %v734
    %v836 = vunpack.c.l.b16 %v735
    %v837 = vunpack.c.h.b16 %v735
    %v838 = vunpack.c.l.b16 %v736
    %v839 = vunpack.c.h.b16 %v736
    %v840 = vunpack.c.l.b16 %v737
    %v841 = vunpack.c.h.b16 %v737
    %v842 = vunpack.c.l.b16 %v738
    %v843 = vunpack.c.h.b16 %v738
    %v844 = vunpack.c.l.b16 %v739
    %v845 = vunpack.c.h.b16 %v739
    %v846 = vunpack.c.l.b16 %v740
    %v847 = vunpack.c.h.b16 %v740
    %v848 = vunpack.c.l.b16 %v741
    %v849 = vunpack.c.h.b16 %v741
    %v850 = vpack.c.b16 %v788, %v786
    %v851 = vpack.c.b16 %v789, %v787
    %v852 = vpack.c.b16 %v792, %v790
    %v853 = vpack.c.b16 %v793, %v791
    %v854 = vpack.c.b16 %v796, %v794
    %v855 = vpack.c.b16 %v797, %v795
    %v856 = vpack.c.b16 %v800, %v798
    %v857 = vpack.c.b16 %v801, %v799
    %v858 = vpack.c.b16 %v804, %v802
    %v859 = vpack.c.b16 %v805, %v803
    %v860 = vpack.c.b16 %v808, %v806
    %v861 = vpack.c.b16 %v809, %v807
    %v862 = vpack.c.b16 %v812, %v810
    %v863 = vpack.c.b16 %v813, %v811
    %v864 = vpack.c.b16 %v816, %v814
    %v865 = vpack.c.b16 %v817, %v815
    %v866 = vpack.c.b16 %v820, %v818
    %v867 = vpack.c.b16 %v821, %v819
    %v868 = vpack.c.b16 %v824, %v822
    %v869 = vpack.c.b16 %v825, %v823
    %v870 = vpack.c.b16 %v828, %v826
    %v871 = vpack.c.b16 %v829, %v827
    %v872 = vpack.c.b16 %v832, %v830
    %v873 = vpack.c.b16 %v833, %v831
    %v874 = vpack.c.b16 %v836, %v834
    %v875 = vpack.c.b16 %v837, %v835
    %v876 = vpack.c.b16 %v840, %v838
    %v877 = vpack.c.b16 %v841, %v839
    %v878 = vpack.c.b16 %v844, %v842
    %v879 = vpack.c.b16 %v845, %v843
    %v880 = vpack.c.b16 %v848, %v846
    %v881 = vpack.c.b16 %v849, %v847
    %914 = vmatprep.subr.bf16.mxu0 %v851
    %915 = vmatpush1.bf16.msra.mxu0 %v850
    %916 = vmatprep.subr.bf16.mxu0 %v853
    %917 = vmatpush1.bf16.msra.mxu0 %v852
    %918 = vmatprep.subr.bf16.mxu0 %v855
    %919 = vmatpush1.bf16.msra.mxu0 %v854
    %920 = vmatprep.subr.bf16.mxu0 %v857
    %921 = vmatpush1.bf16.msra.mxu0 %v856
    %922 = vmatprep.subr.bf16.mxu0 %v859
    %923 = vmatpush1.bf16.msra.mxu0 %v858
    %924 = vmatprep.subr.bf16.mxu0 %v861
    %925 = vmatpush1.bf16.msra.mxu0 %v860
    %926 = vmatprep.subr.bf16.mxu0 %v863
    %927 = vmatpush1.bf16.msra.mxu0 %v862
    %928 = vmatprep.subr.bf16.mxu0 %v865
    %929 = vmatpush1.bf16.msra.mxu0 %v864
    %930 = vmatprep.subr.bf16.mxu0 %v867
    %931 = vmatpush1.bf16.msra.mxu0 %v866
    %932 = vmatprep.subr.bf16.mxu0 %v869
    %933 = vmatpush1.bf16.msra.mxu0 %v868
    %934 = vmatprep.subr.bf16.mxu0 %v871
    %935 = vmatpush1.bf16.msra.mxu0 %v870
    %936 = vmatprep.subr.bf16.mxu0 %v873
    %937 = vmatpush1.bf16.msra.mxu0 %v872
    %938 = vmatprep.subr.bf16.mxu0 %v875
    %939 = vmatpush1.bf16.msra.mxu0 %v874
    %940 = vmatprep.subr.bf16.mxu0 %v877
    %941 = vmatpush1.bf16.msra.mxu0 %v876
    %942 = vmatprep.subr.bf16.mxu0 %v879
    %943 = vmatpush1.bf16.msra.mxu0 %v878
    %944 = vmatprep.subr.bf16.mxu0 %v881
    %945 = vmatpush1.bf16.msra.mxu0 %v880
    %946 = vmatprep.mubr.bf16.mxu0 %v707
    %947 = vmatmul.mubr.bf16.gmra.mrb[0].mxu0 %v706
    %v948 = vpop.f32.mrb[0].mxu0
    %v949 = vadd.f32 %v747, %v948
    %v950 = vpop.f32.mrb[0].mxu0
    %v951 = vadd.f32 %v751, %v950
    %v952 = vpop.f32.mrb[0].mxu0
    %v953 = vadd.f32 %v747, %v952
    %v954 = vpop.f32.mrb[0].mxu0
    %v955 = vadd.f32 %v751, %v954
    %956 = vdwg.mxu0
    %v957 = vmax.f32 %v949, 0.0
    %v958 = vmax.f32 %v951, 0.0
    %v959 = vmax.f32 %v953, 0.0
    %v960 = vmax.f32 %v955, 0.0
    %v961 = vpack.c.bf16 %v959, %v957
    %v962 = vpack.c.bf16 %v960, %v958
    %v963 = vld [vmem:[#allocation2 + $0x308] sm:$0xff]
    %v964 = vld [vmem:[#allocation2 + $0x318] sm:$0xff]
    %v965 = vld [vmem:[#allocation2 + $0x328] sm:$0xff]
    %v966 = vld [vmem:[#allocation2 + $0x338] sm:$0xff]
    %v967 = vld [vmem:[#allocation2 + $0x348] sm:$0xff]
    %v968 = vld [vmem:[#allocation2 + $0x358] sm:$0xff]
    %v969 = vld [vmem:[#allocation2 + $0x368] sm:$0xff]
    %v970 = vld [vmem:[#allocation2 + $0x378] sm:$0xff]
    %v971 = vld [vmem:[#allocation2 + $0x388] sm:$0xff]
    %v972 = vld [vmem:[#allocation2 + $0x398] sm:$0xff]
    %v973 = vld [vmem:[#allocation2 + $0x3a8] sm:$0xff]
    %v974 = vld [vmem:[#allocation2 + $0x3b8] sm:$0xff]
    %v975 = vld [vmem:[#allocation2 + $0x3c8] sm:$0xff]
    %v976 = vld [vmem:[#allocation2 + $0x3d8] sm:$0xff]
    %v977 = vld [vmem:[#allocation2 + $0x3e8] sm:$0xff]
    %v978 = vld [vmem:[#allocation2 + $0x3f8] sm:$0xff]
    %v979 = vld [vmem:[#allocation2 + $0x408] sm:$0xff]
    %v980 = vld [vmem:[#allocation2 + $0x418] sm:$0xff]
    %v981 = vld [vmem:[#allocation2 + $0x428] sm:$0xff]
    %v982 = vld [vmem:[#allocation2 + $0x438] sm:$0xff]
    %v983 = vld [vmem:[#allocation2 + $0x448] sm:$0xff]
    %v984 = vld [vmem:[#allocation2 + $0x458] sm:$0xff]
    %v985 = vld [vmem:[#allocation2 + $0x468] sm:$0xff]
    %v986 = vld [vmem:[#allocation2 + $0x478] sm:$0xff]
    %v987 = vld [vmem:[#allocation2 + $0x488] sm:$0xff]
    %v988 = vld [vmem:[#allocation2 + $0x498] sm:$0xff]
    %v989 = vld [vmem:[#allocation2 + $0x4a8] sm:$0xff]
    %v990 = vld [vmem:[#allocation2 + $0x4b8] sm:$0xff]
    %v991 = vld [vmem:[#allocation2 + $0x4c8] sm:$0xff]
    %v992 = vld [vmem:[#allocation2 + $0x4d8] sm:$0xff]
    %v993 = vld [vmem:[#allocation2 + $0x4e8] sm:$0xff]
    %v994 = vld [vmem:[#allocation2 + $0x4f8] sm:$0xff]
    %v995 = vld [vmem:[#allocation4 + $0x8] sm:$0x3]
    %v997 = vlaneseq
    %v998 = vshrl.u32 %v997, 7
    %v999 = vsub.s32 0, %v998
    %v1000 = vrot.slane %v995, %v999
    %v1001 = vlaneseq
    %v1002 = vshrl.u32 %v1001, 7
    %v1003 = vsub.s32 1, %v1002
    %v1004 = vrot.slane %v995, %v1003
    %v1039 = vunpack.c.l.b16 %v963
    %v1040 = vunpack.c.h.b16 %v963
    %v1041 = vunpack.c.l.b16 %v964
    %v1042 = vunpack.c.h.b16 %v964
    %v1043 = vunpack.c.l.b16 %v965
    %v1044 = vunpack.c.h.b16 %v965
    %v1045 = vunpack.c.l.b16 %v966
    %v1046 = vunpack.c.h.b16 %v966
    %v1047 = vunpack.c.l.b16 %v967
    %v1048 = vunpack.c.h.b16 %v967
    %v1049 = vunpack.c.l.b16 %v968
    %v1050 = vunpack.c.h.b16 %v968
    %v1051 = vunpack.c.l.b16 %v969
    %v1052 = vunpack.c.h.b16 %v969
    %v1053 = vunpack.c.l.b16 %v970
    %v1054 = vunpack.c.h.b16 %v970
    %v1055 = vunpack.c.l.b16 %v971
    %v1056 = vunpack.c.h.b16 %v971
    %v1057 = vunpack.c.l.b16 %v972
    %v1058 = vunpack.c.h.b16 %v972
    %v1059 = vunpack.c.l.b16 %v973
    %v1060 = vunpack.c.h.b16 %v973
    %v1061 = vunpack.c.l.b16 %v974
    %v1062 = vunpack.c.h.b16 %v974
    %v1063 = vunpack.c.l.b16 %v975
    %v1064 = vunpack.c.h.b16 %v975
    %v1065 = vunpack.c.l.b16 %v976
    %v1066 = vunpack.c.h.b16 %v976
    %v1067 = vunpack.c.l.b16 %v977
    %v1068 = vunpack.c.h.b16 %v977
    %v1069 = vunpack.c.l.b16 %v978
    %v1070 = vunpack.c.h.b16 %v978
    %v1071 = vunpack.c.l.b16 %v979
    %v1072 = vunpack.c.h.b16 %v979
    %v1073 = vunpack.c.l.b16 %v980
    %v1074 = vunpack.c.h.b16 %v980
    %v1075 = vunpack.c.l.b16 %v981
    %v1076 = vunpack.c.h.b16 %v981
    %v1077 = vunpack.c.l.b16 %v982
    %v1078 = vunpack.c.h.b16 %v982
    %v1079 = vunpack.c.l.b16 %v983
    %v1080 = vunpack.c.h.b16 %v983
    %v1081 = vunpack.c.l.b16 %v984
    %v1082 = vunpack.c.h.b16 %v984
    %v1083 = vunpack.c.l.b16 %v985
    %v1084 = vunpack.c.h.b16 %v985
    %v1085 = vunpack.c.l.b16 %v986
    %v1086 = vunpack.c.h.b16 %v986
    %v1087 = vunpack.c.l.b16 %v987
    %v1088 = vunpack.c.h.b16 %v987
    %v1089 = vunpack.c.l.b16 %v988
    %v1090 = vunpack.c.h.b16 %v988
    %v1091 = vunpack.c.l.b16 %v989
    %v1092 = vunpack.c.h.b16 %v989
    %v1093 = vunpack.c.l.b16 %v990
    %v1094 = vunpack.c.h.b16 %v990
    %v1095 = vunpack.c.l.b16 %v991
    %v1096 = vunpack.c.h.b16 %v991
    %v1097 = vunpack.c.l.b16 %v992
    %v1098 = vunpack.c.h.b16 %v992
    %v1099 = vunpack.c.l.b16 %v993
    %v1100 = vunpack.c.h.b16 %v993
    %v1101 = vunpack.c.l.b16 %v994
    %v1102 = vunpack.c.h.b16 %v994
    %v1103 = vpack.c.b16 %v1041, %v1039
    %v1104 = vpack.c.b16 %v1042, %v1040
    %v1105 = vpack.c.b16 %v1045, %v1043
    %v1106 = vpack.c.b16 %v1046, %v1044
    %v1107 = vpack.c.b16 %v1049, %v1047
    %v1108 = vpack.c.b16 %v1050, %v1048
    %v1109 = vpack.c.b16 %v1053, %v1051
    %v1110 = vpack.c.b16 %v1054, %v1052
    %v1111 = vpack.c.b16 %v1057, %v1055
    %v1112 = vpack.c.b16 %v1058, %v1056
    %v1113 = vpack.c.b16 %v1061, %v1059
    %v1114 = vpack.c.b16 %v1062, %v1060
    %v1115 = vpack.c.b16 %v1065, %v1063
    %v1116 = vpack.c.b16 %v1066, %v1064
    %v1117 = vpack.c.b16 %v1069, %v1067
    %v1118 = vpack.c.b16 %v1070, %v1068
    %v1119 = vpack.c.b16 %v1073, %v1071
    %v1120 = vpack.c.b16 %v1074, %v1072
    %v1121 = vpack.c.b16 %v1077, %v1075
    %v1122 = vpack.c.b16 %v1078, %v1076
    %v1123 = vpack.c.b16 %v1081, %v1079
    %v1124 = vpack.c.b16 %v1082, %v1080
    %v1125 = vpack.c.b16 %v1085, %v1083
    %v1126 = vpack.c.b16 %v1086, %v1084
    %v1127 = vpack.c.b16 %v1089, %v1087
    %v1128 = vpack.c.b16 %v1090, %v1088
    %v1129 = vpack.c.b16 %v1093, %v1091
    %v1130 = vpack.c.b16 %v1094, %v1092
    %v1131 = vpack.c.b16 %v1097, %v1095
    %v1132 = vpack.c.b16 %v1098, %v1096
    %v1133 = vpack.c.b16 %v1101, %v1099
    %v1134 = vpack.c.b16 %v1102, %v1100
    %1167 = vmatprep.subr.bf16.mxu0 %v1104
    %1168 = vmatpush1.bf16.msra.mxu0 %v1103
    %1169 = vmatprep.subr.bf16.mxu0 %v1106
    %1170 = vmatpush1.bf16.msra.mxu0 %v1105
    %1171 = vmatprep.subr.bf16.mxu0 %v1108
    %1172 = vmatpush1.bf16.msra.mxu0 %v1107
    %1173 = vmatprep.subr.bf16.mxu0 %v1110
    %1174 = vmatpush1.bf16.msra.mxu0 %v1109
    %1175 = vmatprep.subr.bf16.mxu0 %v1112
    %1176 = vmatpush1.bf16.msra.mxu0 %v1111
    %1177 = vmatprep.subr.bf16.mxu0 %v1114
    %1178 = vmatpush1.bf16.msra.mxu0 %v1113
    %1179 = vmatprep.subr.bf16.mxu0 %v1116
    %1180 = vmatpush1.bf16.msra.mxu0 %v1115
    %1181 = vmatprep.subr.bf16.mxu0 %v1118
    %1182 = vmatpush1.bf16.msra.mxu0 %v1117
    %1183 = vmatprep.subr.bf16.mxu0 %v1120
    %1184 = vmatpush1.bf16.msra.mxu0 %v1119
    %1185 = vmatprep.subr.bf16.mxu0 %v1122
    %1186 = vmatpush1.bf16.msra.mxu0 %v1121
    %1187 = vmatprep.subr.bf16.mxu0 %v1124
    %1188 = vmatpush1.bf16.msra.mxu0 %v1123
    %1189 = vmatprep.subr.bf16.mxu0 %v1126
    %1190 = vmatpush1.bf16.msra.mxu0 %v1125
    %1191 = vmatprep.subr.bf16.mxu0 %v1128
    %1192 = vmatpush1.bf16.msra.mxu0 %v1127
    %1193 = vmatprep.subr.bf16.mxu0 %v1130
    %1194 = vmatpush1.bf16.msra.mxu0 %v1129
    %1195 = vmatprep.subr.bf16.mxu0 %v1132
    %1196 = vmatpush1.bf16.msra.mxu0 %v1131
    %1197 = vmatprep.subr.bf16.mxu0 %v1134
    %1198 = vmatpush1.bf16.msra.mxu0 %v1133
    %1199 = vmatprep.mubr.bf16.mxu0 %v709
    %1200 = vmatmul.mubr.bf16.gmra.mrb[0].mxu0 %v708
    %v1201 = vpop.f32.mrb[0].mxu0
    %v1202 = vadd.f32 %v1000, %v1201
    %v1203 = vpop.f32.mrb[0].mxu0
    %v1204 = vadd.f32 %v1004, %v1203
    %v1205 = vpop.f32.mrb[0].mxu0
    %v1206 = vadd.f32 %v1000, %v1205
    %v1207 = vpop.f32.mrb[0].mxu0
    %v1208 = vadd.f32 %v1004, %v1207
    %1209 = vdwg.mxu0
    %v1210 = vmax.f32 %v1202, 0.0
    %v1211 = vmax.f32 %v1204, 0.0
    %v1212 = vmax.f32 %v1206, 0.0
    %v1213 = vmax.f32 %v1208, 0.0
    %v1214 = vpack.c.bf16 %v1212, %v1210
    %v1215 = vpack.c.bf16 %v1213, %v1211
    %v1216 = vld [vmem:[#allocation2 + $0x500] sm:$0xf]
    %v1217 = vld [vmem:[#allocation2 + $0x510] sm:$0xf]
    %v1218 = vld [vmem:[#allocation2 + $0x520] sm:$0xf]
    %v1219 = vld [vmem:[#allocation2 + $0x530] sm:$0xf]
    %v1220 = vld [vmem:[#allocation2 + $0x540] sm:$0xf]
    %v1221 = vld [vmem:[#allocation2 + $0x550] sm:$0xf]
    %v1222 = vld [vmem:[#allocation2 + $0x560] sm:$0xf]
    %v1223 = vld [vmem:[#allocation2 + $0x570] sm:$0xf]
    %v1224 = vld [vmem:[#allocation2 + $0x580] sm:$0xf]
    %v1225 = vld [vmem:[#allocation2 + $0x590] sm:$0xf]
    %v1226 = vld [vmem:[#allocation2 + $0x5a0] sm:$0xf]
    %v1227 = vld [vmem:[#allocation2 + $0x5b0] sm:$0xf]
    %v1228 = vld [vmem:[#allocation2 + $0x5c0] sm:$0xf]
    %v1229 = vld [vmem:[#allocation2 + $0x5d0] sm:$0xf]
    %v1230 = vld [vmem:[#allocation2 + $0x5e0] sm:$0xf]
    %v1231 = vld [vmem:[#allocation2 + $0x5f0] sm:$0xf]
    %v1232 = vld [vmem:[#allocation2 + $0x600] sm:$0xf]
    %v1233 = vld [vmem:[#allocation2 + $0x610] sm:$0xf]
    %v1234 = vld [vmem:[#allocation2 + $0x620] sm:$0xf]
    %v1235 = vld [vmem:[#allocation2 + $0x630] sm:$0xf]
    %v1236 = vld [vmem:[#allocation2 + $0x640] sm:$0xf]
    %v1237 = vld [vmem:[#allocation2 + $0x650] sm:$0xf]
    %v1238 = vld [vmem:[#allocation2 + $0x660] sm:$0xf]
    %v1239 = vld [vmem:[#allocation2 + $0x670] sm:$0xf]
    %v1240 = vld [vmem:[#allocation2 + $0x680] sm:$0xf]
    %v1241 = vld [vmem:[#allocation2 + $0x690] sm:$0xf]
    %v1242 = vld [vmem:[#allocation2 + $0x6a0] sm:$0xf]
    %v1243 = vld [vmem:[#allocation2 + $0x6b0] sm:$0xf]
    %v1244 = vld [vmem:[#allocation2 + $0x6c0] sm:$0xf]
    %v1245 = vld [vmem:[#allocation2 + $0x6d0] sm:$0xf]
    %v1246 = vld [vmem:[#allocation2 + $0x6e0] sm:$0xf]
    %v1247 = vld [vmem:[#allocation2 + $0x6f0] sm:$0xf]
    %v1248 = vld [vmem:[#allocation2 + $0x700] sm:$0xf]
    %v1249 = vld [vmem:[#allocation2 + $0x710] sm:$0xf]
    %v1250 = vld [vmem:[#allocation2 + $0x720] sm:$0xf]
    %v1251 = vld [vmem:[#allocation2 + $0x730] sm:$0xf]
    %v1252 = vld [vmem:[#allocation2 + $0x740] sm:$0xf]
    %v1253 = vld [vmem:[#allocation2 + $0x750] sm:$0xf]
    %v1254 = vld [vmem:[#allocation2 + $0x760] sm:$0xf]
    %v1255 = vld [vmem:[#allocation2 + $0x770] sm:$0xf]
    %v1256 = vld [vmem:[#allocation2 + $0x780] sm:$0xf]
    %v1257 = vld [vmem:[#allocation2 + $0x790] sm:$0xf]
    %v1258 = vld [vmem:[#allocation2 + $0x7a0] sm:$0xf]
    %v1259 = vld [vmem:[#allocation2 + $0x7b0] sm:$0xf]
    %v1260 = vld [vmem:[#allocation2 + $0x7c0] sm:$0xf]
    %v1261 = vld [vmem:[#allocation2 + $0x7d0] sm:$0xf]
    %v1262 = vld [vmem:[#allocation2 + $0x7e0] sm:$0xf]
    %v1263 = vld [vmem:[#allocation2 + $0x7f0] sm:$0xf]
    %v1264 = vld [vmem:[#allocation2 + $0x800] sm:$0xf]
    %v1265 = vld [vmem:[#allocation2 + $0x810] sm:$0xf]
    %v1266 = vld [vmem:[#allocation2 + $0x820] sm:$0xf]
    %v1267 = vld [vmem:[#allocation2 + $0x830] sm:$0xf]
    %v1268 = vld [vmem:[#allocation2 + $0x840] sm:$0xf]
    %v1269 = vld [vmem:[#allocation2 + $0x850] sm:$0xf]
    %v1270 = vld [vmem:[#allocation2 + $0x860] sm:$0xf]
    %v1271 = vld [vmem:[#allocation2 + $0x870] sm:$0xf]
    %v1272 = vld [vmem:[#allocation2 + $0x880] sm:$0xf]
    %v1273 = vld [vmem:[#allocation2 + $0x890] sm:$0xf]
    %v1274 = vld [vmem:[#allocation2 + $0x8a0] sm:$0xf]
    %v1275 = vld [vmem:[#allocation2 + $0x8b0] sm:$0xf]
    %v1276 = vld [vmem:[#allocation2 + $0x8c0] sm:$0xf]
    %v1277 = vld [vmem:[#allocation2 + $0x8d0] sm:$0xf]
    %v1278 = vld [vmem:[#allocation2 + $0x8e0] sm:$0xf]
    %v1279 = vld [vmem:[#allocation2 + $0x8f0] sm:$0xf]
    %v1280 = vld [vmem:[#allocation4 + $0xa] sm:$0x1]
    %v1282 = vlaneseq
    %v1283 = vshrl.u32 %v1282, 7
    %v1284 = vsub.s32 0, %v1283
    %v1285 = vrot.slane %v1280, %v1284
    %v1351 = vunpack.c.l.b16 %v1216
    %v1352 = vunpack.c.l.b16 %v1217
    %v1353 = vunpack.c.l.b16 %v1218
    %v1354 = vunpack.c.l.b16 %v1219
    %v1355 = vunpack.c.l.b16 %v1220
    %v1356 = vunpack.c.l.b16 %v1221
    %v1357 = vunpack.c.l.b16 %v1222
    %v1358 = vunpack.c.l.b16 %v1223
    %v1359 = vunpack.c.l.b16 %v1224
    %v1360 = vunpack.c.l.b16 %v1225
    %v1361 = vunpack.c.l.b16 %v1226
    %v1362 = vunpack.c.l.b16 %v1227
    %v1363 = vunpack.c.l.b16 %v1228
    %v1364 = vunpack.c.l.b16 %v1229
    %v1365 = vunpack.c.l.b16 %v1230
    %v1366 = vunpack.c.l.b16 %v1231
    %v1367 = vunpack.c.l.b16 %v1232
    %v1368 = vunpack.c.l.b16 %v1233
    %v1369 = vunpack.c.l.b16 %v1234
    %v1370 = vunpack.c.l.b16 %v1235
    %v1371 = vunpack.c.l.b16 %v1236
    %v1372 = vunpack.c.l.b16 %v1237
    %v1373 = vunpack.c.l.b16 %v1238
    %v1374 = vunpack.c.l.b16 %v1239
    %v1375 = vunpack.c.l.b16 %v1240
    %v1376 = vunpack.c.l.b16 %v1241
    %v1377 = vunpack.c.l.b16 %v1242
    %v1378 = vunpack.c.l.b16 %v1243
    %v1379 = vunpack.c.l.b16 %v1244
    %v1380 = vunpack.c.l.b16 %v1245
    %v1381 = vunpack.c.l.b16 %v1246
    %v1382 = vunpack.c.l.b16 %v1247
    %v1383 = vunpack.c.l.b16 %v1248
    %v1384 = vunpack.c.l.b16 %v1249
    %v1385 = vunpack.c.l.b16 %v1250
    %v1386 = vunpack.c.l.b16 %v1251
    %v1387 = vunpack.c.l.b16 %v1252
    %v1388 = vunpack.c.l.b16 %v1253
    %v1389 = vunpack.c.l.b16 %v1254
    %v1390 = vunpack.c.l.b16 %v1255
    %v1391 = vunpack.c.l.b16 %v1256
    %v1392 = vunpack.c.l.b16 %v1257
    %v1393 = vunpack.c.l.b16 %v1258
    %v1394 = vunpack.c.l.b16 %v1259
    %v1395 = vunpack.c.l.b16 %v1260
    %v1396 = vunpack.c.l.b16 %v1261
    %v1397 = vunpack.c.l.b16 %v1262
    %v1398 = vunpack.c.l.b16 %v1263
    %v1399 = vunpack.c.l.b16 %v1264
    %v1400 = vunpack.c.l.b16 %v1265
    %v1401 = vunpack.c.l.b16 %v1266
    %v1402 = vunpack.c.l.b16 %v1267
    %v1403 = vunpack.c.l.b16 %v1268
    %v1404 = vunpack.c.l.b16 %v1269
    %v1405 = vunpack.c.l.b16 %v1270
    %v1406 = vunpack.c.l.b16 %v1271
    %v1407 = vunpack.c.l.b16 %v1272
    %v1408 = vunpack.c.l.b16 %v1273
    %v1409 = vunpack.c.l.b16 %v1274
    %v1410 = vunpack.c.l.b16 %v1275
    %v1411 = vunpack.c.l.b16 %v1276
    %v1412 = vunpack.c.l.b16 %v1277
    %v1413 = vunpack.c.l.b16 %v1278
    %v1414 = vunpack.c.l.b16 %v1279
    %v1415 = vpack.c.b16 %v1352, %v1351
    %v1416 = vpack.c.b16 %v1354, %v1353
    %v1417 = vpack.c.b16 %v1356, %v1355
    %v1418 = vpack.c.b16 %v1358, %v1357
    %v1419 = vpack.c.b16 %v1360, %v1359
    %v1420 = vpack.c.b16 %v1362, %v1361
    %v1421 = vpack.c.b16 %v1364, %v1363
    %v1422 = vpack.c.b16 %v1366, %v1365
    %v1423 = vpack.c.b16 %v1368, %v1367
    %v1424 = vpack.c.b16 %v1370, %v1369
    %v1425 = vpack.c.b16 %v1372, %v1371
    %v1426 = vpack.c.b16 %v1374, %v1373
    %v1427 = vpack.c.b16 %v1376, %v1375
    %v1428 = vpack.c.b16 %v1378, %v1377
    %v1429 = vpack.c.b16 %v1380, %v1379
    %v1430 = vpack.c.b16 %v1382, %v1381
    %v1431 = vpack.c.b16 %v1384, %v1383
    %v1432 = vpack.c.b16 %v1386, %v1385
    %v1433 = vpack.c.b16 %v1388, %v1387
    %v1434 = vpack.c.b16 %v1390, %v1389
    %v1435 = vpack.c.b16 %v1392, %v1391
    %v1436 = vpack.c.b16 %v1394, %v1393
    %v1437 = vpack.c.b16 %v1396, %v1395
    %v1438 = vpack.c.b16 %v1398, %v1397
    %v1439 = vpack.c.b16 %v1400, %v1399
    %v1440 = vpack.c.b16 %v1402, %v1401
    %v1441 = vpack.c.b16 %v1404, %v1403
    %v1442 = vpack.c.b16 %v1406, %v1405
    %v1443 = vpack.c.b16 %v1408, %v1407
    %v1444 = vpack.c.b16 %v1410, %v1409
    %v1445 = vpack.c.b16 %v1412, %v1411
    %v1446 = vpack.c.b16 %v1414, %v1413
    %1479 = vmatprep.subr.bf16.mxu0 0
    %1480 = vmatpush1.bf16.msra.mxu0 %v1415
    %1481 = vmatprep.subr.bf16.mxu0 0
    %1482 = vmatpush1.bf16.msra.mxu0 %v1416
    %1483 = vmatprep.subr.bf16.mxu0 0
    %1484 = vmatpush1.bf16.msra.mxu0 %v1417
    %1485 = vmatprep.subr.bf16.mxu0 0
    %1486 = vmatpush1.bf16.msra.mxu0 %v1418
    %1487 = vmatprep.subr.bf16.mxu0 0
    %1488 = vmatpush1.bf16.msra.mxu0 %v1419
    %1489 = vmatprep.subr.bf16.mxu0 0
    %1490 = vmatpush1.bf16.msra.mxu0 %v1420
    %1491 = vmatprep.subr.bf16.mxu0 0
    %1492 = vmatpush1.bf16.msra.mxu0 %v1421
    %1493 = vmatprep.subr.bf16.mxu0 0
    %1494 = vmatpush1.bf16.msra.mxu0 %v1422
    %1495 = vmatprep.subr.bf16.mxu0 0
    %1496 = vmatpush1.bf16.msra.mxu0 %v1423
    %1497 = vmatprep.subr.bf16.mxu0 0
    %1498 = vmatpush1.bf16.msra.mxu0 %v1424
    %1499 = vmatprep.subr.bf16.mxu0 0
    %1500 = vmatpush1.bf16.msra.mxu0 %v1425
    %1501 = vmatprep.subr.bf16.mxu0 0
    %1502 = vmatpush1.bf16.msra.mxu0 %v1426
    %1503 = vmatprep.subr.bf16.mxu0 0
    %1504 = vmatpush1.bf16.msra.mxu0 %v1427
    %1505 = vmatprep.subr.bf16.mxu0 0
    %1506 = vmatpush1.bf16.msra.mxu0 %v1428
    %1507 = vmatprep.subr.bf16.mxu0 0
    %1508 = vmatpush1.bf16.msra.mxu0 %v1429
    %1509 = vmatprep.subr.bf16.mxu0 0
    %1510 = vmatpush1.bf16.msra.mxu0 %v1430
    %1511 = vmatprep.mubr.bf16.mxu0 %v962
    %1512 = vmatmul.mubr.bf16.gmra.mrb[0].mxu0 %v961
    %v1513 = vpop.f32.mrb[0].mxu0
    %v1514 = vadd.f32 %v1285, %v1513
    %v1515 = vpop.f32.mrb[0].mxu0
    %v1516 = vpop.f32.mrb[0].mxu0
    %v1517 = vadd.f32 %v1285, %v1516
    %v1518 = vpop.f32.mrb[0].mxu0
    %1519 = vdwg.mxu0
    %1520 = vmatprep.subr.bf16.mxu0 0
    %1521 = vmatpush1.bf16.msra.mxu0 %v1431
    %1522 = vmatprep.subr.bf16.mxu0 0
    %1523 = vmatpush1.bf16.msra.mxu0 %v1432
    %1524 = vmatprep.subr.bf16.mxu0 0
    %1525 = vmatpush1.bf16.msra.mxu0 %v1433
    %1526 = vmatprep.subr.bf16.mxu0 0
    %1527 = vmatpush1.bf16.msra.mxu0 %v1434
    %1528 = vmatprep.subr.bf16.mxu0 0
    %1529 = vmatpush1.bf16.msra.mxu0 %v1435
    %1530 = vmatprep.subr.bf16.mxu0 0
    %1531 = vmatpush1.bf16.msra.mxu0 %v1436
    %1532 = vmatprep.subr.bf16.mxu0 0
    %1533 = vmatpush1.bf16.msra.mxu0 %v1437
    %1534 = vmatprep.subr.bf16.mxu0 0
    %1535 = vmatpush1.bf16.msra.mxu0 %v1438
    %1536 = vmatprep.subr.bf16.mxu0 0
    %1537 = vmatpush1.bf16.msra.mxu0 %v1439
    %1538 = vmatprep.subr.bf16.mxu0 0
    %1539 = vmatpush1.bf16.msra.mxu0 %v1440
    %1540 = vmatprep.subr.bf16.mxu0 0
    %1541 = vmatpush1.bf16.msra.mxu0 %v1441
    %1542 = vmatprep.subr.bf16.mxu0 0
    %1543 = vmatpush1.bf16.msra.mxu0 %v1442
    %1544 = vmatprep.subr.bf16.mxu0 0
    %1545 = vmatpush1.bf16.msra.mxu0 %v1443
    %1546 = vmatprep.subr.bf16.mxu0 0
    %1547 = vmatpush1.bf16.msra.mxu0 %v1444
    %1548 = vmatprep.subr.bf16.mxu0 0
    %1549 = vmatpush1.bf16.msra.mxu0 %v1445
    %1550 = vmatprep.subr.bf16.mxu0 0
    %1551 = vmatpush1.bf16.msra.mxu0 %v1446
    %1552 = vmatprep.mubr.bf16.mxu0 %v1215
    %1553 = vmatmul.mubr.bf16.gmra.mrb[0].mxu0 %v1214
    %v1554 = vpop.f32.mrb[0].mxu0
    %v1555 = vadd.f32 %v1514, %v1554
    %v1556 = vpop.f32.mrb[0].mxu0
    %v1557 = vpop.f32.mrb[0].mxu0
    %v1558 = vadd.f32 %v1517, %v1557
    %v1559 = vpop.f32.mrb[0].mxu0
    %1560 = vdwg.mxu0
    %v1561 = vlaneseq
    %v1562 = vand.u32 %v1561, 127
    %vm1563 = vcmp.lt.s32.totalorder %v1562, 5
    %vm1564 = vcmp.eq.s32.totalorder %v1562, 5
    %v1565 = vsel %vm1563, %v1555, -1e+30
    %v1566 = vsel %vm1563, %v1558, -1e+30
    %1567 = vmax.xlane.f32.xlu0 %v1565
    %v1568 = vpop.xlane.xlu0 %1567
    %1569 = vmax.xlane.f32.xlu0 %v1566
    %v1570 = vpop.xlane.xlu0 %1569
    %v1571 = vsub.f32 %v1565, %v1568
    %v1572 = vsub.f32 %v1566, %v1570
    %v1573 = vmul.f32 %v1571, 1.442695
    %v1574 = vpow.pop %v1573
    %v1575 = vmul.f32 %v1572, 1.442695
    %v1576 = vpow.pop %v1575
    %1577 = vadd.xlane.f32.xlu0 %v1574
    %v1578 = vpop.xlane.xlu0 %1577
    %1579 = vadd.xlane.f32.xlu0 %v1576
    %v1580 = vpop.xlane.xlu0 %1579
    %v1581 = vrcp.pop %v1578
    %v1582 = vrcp.pop %v1580
    %v1583 = vmul.f32 %v1574, %v1581
    %v1584 = vmul.f32 %v1576, %v1582
    %v1585 = vsel %vm1564, %v1555, 0.0
    %v1586 = vsel %vm1564, %v1558, 0.0
    %v1587 = vsel %vm1563, %v1583, %v1585
    %v1588 = vsel %vm1563, %v1584, %v1586
    %v1589 = vpack.c.bf16 %v1588, %v1587
    %v1591 = vunpack.c.l.b16 %v1589
    %v1592 = vunpack.c.h.b16 %v1589
    %v1593 = vpack.c.b16 %v1591, %v1591
    %v1594 = vpack.c.b16 %v1592, %v1592
    %1597 = vst [vmem:[%s3] sm:$0xf] %v1593
    %1598 = vst [vmem:[%s3 + $0x4] sm:$0xf] %v1594
    // Predicated region
    $region22: #{deep_network_forward.1} parent=1 // pred_check
      _
    $region23: #{deep_network_forward.1} parent=1 // pred_check_branch
      %1600 = sbr.rel (0) target = $region25
    $region24: #{deep_network_forward.1} parent=1 // pred_region
      _
    $region25: #{deep_network_forward.1} parent=1 // pred_fallthru
      _
    // Predicated region
    $region26: #{deep_network_forward.1} parent=1 // pred_check
      _
    $region27: #{deep_network_forward.1} parent=1 // pred_check_branch
      %1602 = sbr.rel (0) target = $region29
    $region28: #{deep_network_forward.1} parent=1 // pred_region
      _
    $region29: #{deep_network_forward.1} parent=1 // pred_fallthru
      _
    %1603 = vsyncpa [#allocation3], 1
    %1604 = vsyncpa [#allocation5], 1

</llo_original>
